<compile_context>
chip_gen: v5e
topology: v5e:2x2
jax: 0.10.0
libtpu: 0.0.40
codegen_flags: <defaults>
</compile_context>

<pallas_src>
import math

import jax
import jax.numpy as jnp
from jax.experimental import pallas as pl
from jax.experimental.pallas import tpu as pltpu

# config (matches the module): n_embd=32, n_head=4, n_layer=2, bias=True,
# dropout=0.0
B, S, E, H, NLAYER = 2, 8, 32, 4, 2
DK = E // H
BS = B * S
EPS = 1e-5


def _layer_norm(x, gamma, beta):
    # F.layer_norm over last dim, biased variance, eps=1e-5
    mean = jnp.mean(x, axis=-1, keepdims=True)
    var = jnp.mean((x - mean) ** 2, axis=-1, keepdims=True)
    return (x - mean) * jax.lax.rsqrt(var + EPS) * gamma + beta


def encoder_kernel(x_ref, wbig_ref, w2_ref, vec_ref, fvec_ref, o_ref, attn_scr):
    """Fused: [norm1 -> MHA -> +res -> norm2 -> FFN -> +res] x NLAYER -> norm."""
    x = x_ref[...].astype(jnp.float32)                       # (B*S, E)

    for l in range(NLAYER):                                   # static unroll
        # ---- packed parameters (static slices of the packed arrays) ----
        wqkv = wbig_ref[l, :, 0:3 * E]                        # (E,3E), wq pre-scaled
        wo = wbig_ref[l, :, 3 * E:4 * E]                      # (E, E)
        w1 = wbig_ref[l, :, 4 * E:8 * E]                      # (E, 4E)
        w2 = w2_ref[l]                                        # (4E, E)
        g1 = vec_ref[l, 0:1, 0:E]
        b1 = vec_ref[l, 1:2, 0:E]
        bqkv = vec_ref[l, 2:3, 0:3 * E]                       # bq pre-scaled
        bo = vec_ref[l, 3:4, 0:E]
        g2 = vec_ref[l, 4:5, 0:E]
        b2 = vec_ref[l, 5:6, 0:E]
        bf1 = vec_ref[l, 6:7, 0:4 * E]
        bf2 = vec_ref[l, 7:8, 0:E]

        # x = norm1(x)  (the reference overwrites x before the residual add)
        xn = _layer_norm(x, g1, b1)

        # fused q/k/v projection: one (B*S,E) @ (E,3E) matmul
        qkv = jnp.dot(xn, wqkv, preferred_element_type=jnp.float32) + bqkv

        # multi-head attention; each head writes its (B*S, DK) output into its
        # column slot of the VMEM scratch so the out-projection is one matmul.
        for h in range(H):
            qh = qkv[:, h * DK:(h + 1) * DK].reshape(B, S, DK)
            kh = qkv[:, E + h * DK:E + (h + 1) * DK].reshape(B, S, DK)
            vh = qkv[:, 2 * E + h * DK:2 * E + (h + 1) * DK].reshape(B, S, DK)
            att = jnp.einsum('bqd,bkd->bqk', qh, kh,
                             preferred_element_type=jnp.float32)
            att = att - jnp.max(att, axis=-1, keepdims=True)
            p = jnp.exp(att)
            p = p * pl.reciprocal(jnp.sum(p, axis=-1, keepdims=True),
                                  approx=True)
            oh = jnp.einsum('bqk,bkd->bqd', p, vh,
                            preferred_element_type=jnp.float32)
            attn_scr[:, h * DK:(h + 1) * DK] = oh.reshape(BS, DK)

        att_out = jnp.dot(attn_scr[...], wo,
                          preferred_element_type=jnp.float32) + bo

        # residual 1 (added to the *normalized* activation, as in the module)
        x = xn + att_out

        # FFN block: x + fc2(relu(fc1(norm2(x))))
        x2n = _layer_norm(x, g2, b2)
        hidden = jnp.maximum(
            jnp.dot(x2n, w1, preferred_element_type=jnp.float32) + bf1, 0.0)
        x = x + jnp.dot(hidden, w2, preferred_element_type=jnp.float32) + bf2
        # TODO(synk): nn.Dropout with p=0.0 / eval mode is identity, omitted.

    # final LayerNorm
    o_ref[...] = _layer_norm(x, fvec_ref[0:1, :],
                             fvec_ref[1:2, :]).astype(o_ref.dtype)


@jax.jit
def encoder_forward(x, wbig_all, w2_all, vec_all, fvec):
    bsz, seq, emb = x.shape
    vmem = pl.BlockSpec(memory_space=pltpu.MemorySpace.VMEM)
    out2d = pl.pallas_call(
        encoder_kernel,
        out_shape=jax.ShapeDtypeStruct((bsz * seq, emb), x.dtype),
        in_specs=[vmem] * 5,
        out_specs=vmem,
        scratch_shapes=[pltpu.VMEM((bsz * seq, emb), jnp.float32)],
    )(x.reshape(bsz * seq, emb), wbig_all, w2_all, vec_all, fvec)
    return out2d.reshape(bsz, seq, emb)


def init_params(key):
    """Unpacked params (linear weights already stored (in_features, out_features))."""
    def lin(k, din, dout):
        kw, kb = jax.random.split(k)
        w = jax.random.normal(kw, (din, dout), jnp.float32) * 0.02
        b = jax.random.normal(kb, (dout,), jnp.float32) * 0.02
        return w, b

    layers = []
    for lkey in jax.random.split(key, NLAYER):
        ks = jax.random.split(lkey, 6)
        wq, bq = lin(ks[0], E, E)
        wk, bk = lin(ks[1], E, E)
        wv, bv = lin(ks[2], E, E)
        wo, bo = lin(ks[3], E, E)
        w1, bf1 = lin(ks[4], E, 4 * E)
        w2, bf2 = lin(ks[5], 4 * E, E)
        layers.append(dict(
            g1=jnp.ones((E,), jnp.float32), b1=jnp.zeros((E,), jnp.float32),
            wq=wq, bq=bq, wk=wk, bk=bk, wv=wv, bv=bv, wo=wo, bo=bo,
            g2=jnp.ones((E,), jnp.float32), b2=jnp.zeros((E,), jnp.float32),
            w1=w1, bf1=bf1, w2=w2, bf2=bf2))
    return dict(layers=layers,
                gf=jnp.ones((E,), jnp.float32),
                bf=jnp.zeros((E,), jnp.float32))


def pack_params(params):
    """One-time, wrapper-side packing.  Per layer: a (E, 8E) weight slab
    [wq*s | wk | wv | wo | w1], the (4E, E) fc2 weight, and an (8, 4E) vector
    slab; the 1/sqrt(d_k) attention scale is folded into wq/bq here."""
    scale = 1.0 / math.sqrt(DK)

    def row(v):
        v = v.reshape(-1)
        return jnp.pad(v, (0, 4 * E - v.shape[0]))

    wbig, w2s, vecs = [], [], []
    for lp in params['layers']:
        wqkv = jnp.concatenate([lp['wq'] * scale, lp['wk'], lp['wv']], axis=1)
        wbig.append(jnp.concatenate([wqkv, lp['wo'], lp['w1']], axis=1))
        w2s.append(lp['w2'])
        bqkv = jnp.concatenate([lp['bq'] * scale, lp['bk'], lp['bv']])
        vecs.append(jnp.stack([row(lp['g1']), row(lp['b1']), row(bqkv),
                               row(lp['bo']), row(lp['g2']), row(lp['b2']),
                               row(lp['bf1']), row(lp['bf2'])]))
    fvec = jnp.stack([params['gf'], params['bf']])            # (2, E)
    return jnp.stack(wbig), jnp.stack(w2s), jnp.stack(vecs), fvec


def encoder_reference(x, params):
    """Pure-JAX mirror of the PyTorch module, for a correctness check."""
    def ln(x, g, b):
        m = jnp.mean(x, -1, keepdims=True)
        v = jnp.mean((x - m) ** 2, -1, keepdims=True)
        return (x - m) / jnp.sqrt(v + EPS) * g + b

    def split_heads(t):
        return t.reshape(B, S, H, DK).transpose(0, 2, 1, 3)

    for lp in params['layers']:
        xn = ln(x, lp['g1'], lp['b1'])
        q = split_heads(xn @ lp['wq'] + lp['bq'])
        k = split_heads(xn @ lp['wk'] + lp['bk'])
        v = split_heads(xn @ lp['wv'] + lp['bv'])
        att = jnp.einsum('bhqd,bhkd->bhqk', q, k) / math.sqrt(DK)
        att = jax.nn.softmax(att, axis=-1)
        oh = jnp.einsum('bhqk,bhkd->bhqd', att, v)
        oh = oh.transpose(0, 2, 1, 3).reshape(B, S, E)
        x = xn + (oh @ lp['wo'] + lp['bo'])
        x2n = ln(x, lp['g2'], lp['b2'])
        hid = jnp.maximum(x2n @ lp['w1'] + lp['bf1'], 0.0)
        x = x + (hid @ lp['w2'] + lp['bf2'])
    return ln(x, params['gf'], params['bf'])


if __name__ == "__main__":
    key = jax.random.PRNGKey(0)
    kx, kp = jax.random.split(key)
    x = jax.random.normal(kx, (B, S, E), jnp.float32)
    params = init_params(kp)
    packed = pack_params(params)

    out = encoder_forward(x, *packed)
    jax.block_until_ready(out)
    assert out.shape == (B, S, E) and out.dtype == jnp.float32

    ref = encoder_reference(x, params)
    err = float(jnp.max(jnp.abs(out - ref)))
    assert err < 1e-2, f"max abs error vs reference: {err}"

    print("KERNEL_OK")
</pallas_src>

<mosaic_0001>
module attributes {stable_mosaic.version = 11 : i64} {
  func.func @encoder_kernel(%arg0: memref<16x32xf32, #tpu.memory_space<vmem>>, %arg1: memref<2x32x256xf32, #tpu.memory_space<vmem>>, %arg2: memref<2x128x32xf32, #tpu.memory_space<vmem>>, %arg3: memref<2x8x128xf32, #tpu.memory_space<vmem>>, %arg4: memref<2x32xf32, #tpu.memory_space<vmem>>, %arg5: memref<16x32xf32, #tpu.memory_space<vmem>>, %arg6: memref<16x32xf32, #tpu.memory_space<vmem>>) attributes {dimension_semantics = [], scalar_prefetch = 0 : i64, scratch_operands = 1 : i64, tpu.core_type = #tpu.core_type<tc>} {
    %c0 = arith.constant 0 : index
    %c0_0 = arith.constant 0 : index
    %0 = vector.load %arg0[%c0, %c0_0] : memref<16x32xf32, #tpu.memory_space<vmem>>, vector<16x32xf32>
    %c0_1 = arith.constant 0 : index
    %c0_2 = arith.constant 0 : index
    %c0_3 = arith.constant 0 : index
    %1 = vector.load %arg1[%c0_1, %c0_2, %c0_3] : memref<2x32x256xf32, #tpu.memory_space<vmem>>, vector<1x32x96xf32>
    %2 = vector.shape_cast %1 : vector<1x32x96xf32> to vector<32x96xf32>
    %c0_4 = arith.constant 0 : index
    %c0_5 = arith.constant 0 : index
    %c96 = arith.constant 96 : index
    %3 = vector.load %arg1[%c0_4, %c0_5, %c96] : memref<2x32x256xf32, #tpu.memory_space<vmem>>, vector<1x32x32xf32>
    %4 = vector.shape_cast %3 : vector<1x32x32xf32> to vector<32x32xf32>
    %c0_6 = arith.constant 0 : index
    %c0_7 = arith.constant 0 : index
    %c128 = arith.constant 128 : index
    %5 = vector.load %arg1[%c0_6, %c0_7, %c128] : memref<2x32x256xf32, #tpu.memory_space<vmem>>, vector<1x32x128xf32>
    %6 = vector.shape_cast %5 : vector<1x32x128xf32> to vector<32x128xf32>
    %c0_8 = arith.constant 0 : index
    %c0_9 = arith.constant 0 : index
    %c0_10 = arith.constant 0 : index
    %7 = vector.load %arg2[%c0_8, %c0_9, %c0_10] : memref<2x128x32xf32, #tpu.memory_space<vmem>>, vector<1x128x32xf32>
    %8 = vector.shape_cast %7 : vector<1x128x32xf32> to vector<128x32xf32>
    %c0_11 = arith.constant 0 : index
    %c0_12 = arith.constant 0 : index
    %c0_13 = arith.constant 0 : index
    %9 = vector.load %arg3[%c0_11, %c0_12, %c0_13] : memref<2x8x128xf32, #tpu.memory_space<vmem>>, vector<1x1x32xf32>
    %10 = vector.shape_cast %9 : vector<1x1x32xf32> to vector<1x32xf32>
    %c0_14 = arith.constant 0 : index
    %c1 = arith.constant 1 : index
    %c0_15 = arith.constant 0 : index
    %11 = vector.load %arg3[%c0_14, %c1, %c0_15] : memref<2x8x128xf32, #tpu.memory_space<vmem>>, vector<1x1x32xf32>
    %12 = vector.shape_cast %11 : vector<1x1x32xf32> to vector<1x32xf32>
    %c0_16 = arith.constant 0 : index
    %c2 = arith.constant 2 : index
    %c0_17 = arith.constant 0 : index
    %13 = vector.load %arg3[%c0_16, %c2, %c0_17] : memref<2x8x128xf32, #tpu.memory_space<vmem>>, vector<1x1x96xf32>
    %14 = vector.shape_cast %13 : vector<1x1x96xf32> to vector<1x96xf32>
    %c0_18 = arith.constant 0 : index
    %c3 = arith.constant 3 : index
    %c0_19 = arith.constant 0 : index
    %15 = vector.load %arg3[%c0_18, %c3, %c0_19] : memref<2x8x128xf32, #tpu.memory_space<vmem>>, vector<1x1x32xf32>
    %16 = vector.shape_cast %15 : vector<1x1x32xf32> to vector<1x32xf32>
    %c0_20 = arith.constant 0 : index
    %c4 = arith.constant 4 : index
    %c0_21 = arith.constant 0 : index
    %17 = vector.load %arg3[%c0_20, %c4, %c0_21] : memref<2x8x128xf32, #tpu.memory_space<vmem>>, vector<1x1x32xf32>
    %18 = vector.shape_cast %17 : vector<1x1x32xf32> to vector<1x32xf32>
    %c0_22 = arith.constant 0 : index
    %c5 = arith.constant 5 : index
    %c0_23 = arith.constant 0 : index
    %19 = vector.load %arg3[%c0_22, %c5, %c0_23] : memref<2x8x128xf32, #tpu.memory_space<vmem>>, vector<1x1x32xf32>
    %20 = vector.shape_cast %19 : vector<1x1x32xf32> to vector<1x32xf32>
    %c0_24 = arith.constant 0 : index
    %c6 = arith.constant 6 : index
    %c0_25 = arith.constant 0 : index
    %21 = vector.load %arg3[%c0_24, %c6, %c0_25] : memref<2x8x128xf32, #tpu.memory_space<vmem>>, vector<1x1x128xf32>
    %22 = vector.shape_cast %21 : vector<1x1x128xf32> to vector<1x128xf32>
    %c0_26 = arith.constant 0 : index
    %c7 = arith.constant 7 : index
    %c0_27 = arith.constant 0 : index
    %23 = vector.load %arg3[%c0_26, %c7, %c0_27] : memref<2x8x128xf32, #tpu.memory_space<vmem>>, vector<1x1x32xf32>
    %24 = vector.shape_cast %23 : vector<1x1x32xf32> to vector<1x32xf32>
    %cst = arith.constant dense<0.000000e+00> : vector<16xf32>
    %25 = vector.multi_reduction <add>, %0, %cst [1] : vector<16x32xf32> to vector<16xf32>
    %26 = vector.shape_cast %25 : vector<16xf32> to vector<16x1xf32>
    %cst_28 = arith.constant 3.200000e+01 : f32
    %27 = vector.broadcast %cst_28 : f32 to vector<16x1xf32>
    %28 = arith.divf %26, %27 : vector<16x1xf32>
    %29 = vector.broadcast %28 : vector<16x1xf32> to vector<16x32xf32>
    %30 = arith.subf %0, %29 : vector<16x32xf32>
    %31 = arith.mulf %30, %30 : vector<16x32xf32>
    %cst_29 = arith.constant dense<0.000000e+00> : vector<16xf32>
    %32 = vector.multi_reduction <add>, %31, %cst_29 [1] : vector<16x32xf32> to vector<16xf32>
    %33 = vector.shape_cast %32 : vector<16xf32> to vector<16x1xf32>
    %cst_30 = arith.constant 3.200000e+01 : f32
    %34 = vector.broadcast %cst_30 : f32 to vector<16x1xf32>
    %35 = arith.divf %33, %34 : vector<16x1xf32>
    %36 = vector.broadcast %28 : vector<16x1xf32> to vector<16x32xf32>
    %37 = arith.subf %0, %36 : vector<16x32xf32>
    %cst_31 = arith.constant 9.99999974E-6 : f32
    %38 = vector.broadcast %cst_31 : f32 to vector<16x1xf32>
    %39 = arith.addf %35, %38 : vector<16x1xf32>
    %40 = math.rsqrt %39 : vector<16x1xf32>
    %41 = vector.broadcast %40 : vector<16x1xf32> to vector<16x32xf32>
    %42 = arith.mulf %37, %41 : vector<16x32xf32>
    %43 = vector.broadcast %10 : vector<1x32xf32> to vector<16x32xf32>
    %44 = arith.mulf %42, %43 : vector<16x32xf32>
    %45 = vector.broadcast %12 : vector<1x32xf32> to vector<16x32xf32>
    %46 = arith.addf %44, %45 : vector<16x32xf32>
    %cst_32 = arith.constant dense<0.000000e+00> : vector<16x96xf32>
    %47 = tpu.matmul %46, %2, %cst_32 {dimension_numbers = #tpu.dot_dimension_numbers<[1], [0], [0], [1], [0, 0, 1, 1], [], []>} : vector<16x32xf32>, vector<32x96xf32>, vector<16x96xf32> -> vector<16x96xf32>
    %48 = vector.broadcast %14 : vector<1x96xf32> to vector<16x96xf32>
    %49 = arith.addf %47, %48 : vector<16x96xf32>
    %50 = vector.extract_strided_slice %49 {offsets = [0, 0], sizes = [16, 8], strides = [1, 1]} : vector<16x96xf32> to vector<16x8xf32>
    %51 = vector.shape_cast %50 : vector<16x8xf32> to vector<2x8x8xf32>
    %52 = vector.extract_strided_slice %49 {offsets = [0, 32], sizes = [16, 8], strides = [1, 1]} : vector<16x96xf32> to vector<16x8xf32>
    %53 = vector.shape_cast %52 : vector<16x8xf32> to vector<2x8x8xf32>
    %54 = vector.extract_strided_slice %49 {offsets = [0, 64], sizes = [16, 8], strides = [1, 1]} : vector<16x96xf32> to vector<16x8xf32>
    %55 = vector.shape_cast %54 : vector<16x8xf32> to vector<2x8x8xf32>
    "tpu.trace_start"() <{level = 10 : i32, message = "bqd,bkd->bqk"}> : () -> ()
    %cst_33 = arith.constant dense<0.000000e+00> : vector<2x8x8xf32>
    %56 = tpu.matmul %51, %53, %cst_33 {dimension_numbers = #tpu.dot_dimension_numbers<[2], [2], [1], [1], [0, 0, 0, 1, 1, 1], [0], [0]>} : vector<2x8x8xf32>, vector<2x8x8xf32>, vector<2x8x8xf32> -> vector<2x8x8xf32>
    "tpu.trace_stop"() : () -> ()
    %cst_34 = arith.constant dense<0xFF800000> : vector<2x8xf32>
    %57 = vector.multi_reduction <maximumf>, %56, %cst_34 [2] : vector<2x8x8xf32> to vector<2x8xf32>
    %58 = vector.shape_cast %57 : vector<2x8xf32> to vector<2x8x1xf32>
    %59 = vector.broadcast %58 : vector<2x8x1xf32> to vector<2x8x8xf32>
    %60 = arith.subf %56, %59 : vector<2x8x8xf32>
    %61 = math.exp %60 : vector<2x8x8xf32>
    %cst_35 = arith.constant dense<0.000000e+00> : vector<2x8xf32>
    %62 = vector.multi_reduction <add>, %61, %cst_35 [2] : vector<2x8x8xf32> to vector<2x8xf32>
    %63 = vector.shape_cast %62 : vector<2x8xf32> to vector<2x8x1xf32>
    %64 = tpu.reciprocal %63 {approx = true} : vector<2x8x1xf32> -> vector<2x8x1xf32>
    %65 = vector.broadcast %64 : vector<2x8x1xf32> to vector<2x8x8xf32>
    %66 = arith.mulf %61, %65 : vector<2x8x8xf32>
    "tpu.trace_start"() <{level = 10 : i32, message = "bqk,bkd->bqd"}> : () -> ()
    %cst_36 = arith.constant dense<0.000000e+00> : vector<2x8x8xf32>
    %67 = tpu.matmul %66, %55, %cst_36 {dimension_numbers = #tpu.dot_dimension_numbers<[2], [1], [1], [2], [0, 0, 0, 1, 1, 2], [0], [0]>} : vector<2x8x8xf32>, vector<2x8x8xf32>, vector<2x8x8xf32> -> vector<2x8x8xf32>
    "tpu.trace_stop"() : () -> ()
    %68 = vector.shape_cast %67 : vector<2x8x8xf32> to vector<16x8xf32>
    %c0_37 = arith.constant 0 : index
    %c0_38 = arith.constant 0 : index
    %69 = vector.load %arg6[%c0_37, %c0_38] : memref<16x32xf32, #tpu.memory_space<vmem>>, vector<16x8xf32>
    tpu.vector_store %arg6[%c0_37, %c0_38], %68 {strides = array<i32>} : memref<16x32xf32, #tpu.memory_space<vmem>>, vector<16x8xf32>,
    %70 = vector.extract_strided_slice %49 {offsets = [0, 8], sizes = [16, 8], strides = [1, 1]} : vector<16x96xf32> to vector<16x8xf32>
    %71 = vector.shape_cast %70 : vector<16x8xf32> to vector<2x8x8xf32>
    %72 = vector.extract_strided_slice %49 {offsets = [0, 40], sizes = [16, 8], strides = [1, 1]} : vector<16x96xf32> to vector<16x8xf32>
    %73 = vector.shape_cast %72 : vector<16x8xf32> to vector<2x8x8xf32>
    %74 = vector.extract_strided_slice %49 {offsets = [0, 72], sizes = [16, 8], strides = [1, 1]} : vector<16x96xf32> to vector<16x8xf32>
    %75 = vector.shape_cast %74 : vector<16x8xf32> to vector<2x8x8xf32>
    "tpu.trace_start"() <{level = 10 : i32, message = "bqd,bkd->bqk"}> : () -> ()
    %cst_39 = arith.constant dense<0.000000e+00> : vector<2x8x8xf32>
    %76 = tpu.matmul %71, %73, %cst_39 {dimension_numbers = #tpu.dot_dimension_numbers<[2], [2], [1], [1], [0, 0, 0, 1, 1, 1], [0], [0]>} : vector<2x8x8xf32>, vector<2x8x8xf32>, vector<2x8x8xf32> -> vector<2x8x8xf32>
    "tpu.trace_stop"() : () -> ()
    %cst_40 = arith.constant dense<0xFF800000> : vector<2x8xf32>
    %77 = vector.multi_reduction <maximumf>, %76, %cst_40 [2] : vector<2x8x8xf32> to vector<2x8xf32>
    %78 = vector.shape_cast %77 : vector<2x8xf32> to vector<2x8x1xf32>
    %79 = vector.broadcast %78 : vector<2x8x1xf32> to vector<2x8x8xf32>
    %80 = arith.subf %76, %79 : vector<2x8x8xf32>
    %81 = math.exp %80 : vector<2x8x8xf32>
    %cst_41 = arith.constant dense<0.000000e+00> : vector<2x8xf32>
    %82 = vector.multi_reduction <add>, %81, %cst_41 [2] : vector<2x8x8xf32> to vector<2x8xf32>
    %83 = vector.shape_cast %82 : vector<2x8xf32> to vector<2x8x1xf32>
    %84 = tpu.reciprocal %83 {approx = true} : vector<2x8x1xf32> -> vector<2x8x1xf32>
    %85 = vector.broadcast %84 : vector<2x8x1xf32> to vector<2x8x8xf32>
    %86 = arith.mulf %81, %85 : vector<2x8x8xf32>
    "tpu.trace_start"() <{level = 10 : i32, message = "bqk,bkd->bqd"}> : () -> ()
    %cst_42 = arith.constant dense<0.000000e+00> : vector<2x8x8xf32>
    %87 = tpu.matmul %86, %75, %cst_42 {dimension_numbers = #tpu.dot_dimension_numbers<[2], [1], [1], [2], [0, 0, 0, 1, 1, 2], [0], [0]>} : vector<2x8x8xf32>, vector<2x8x8xf32>, vector<2x8x8xf32> -> vector<2x8x8xf32>
    "tpu.trace_stop"() : () -> ()
    %88 = vector.shape_cast %87 : vector<2x8x8xf32> to vector<16x8xf32>
    %c0_43 = arith.constant 0 : index
    %c8 = arith.constant 8 : index
    %89 = vector.load %arg6[%c0_43, %c8] : memref<16x32xf32, #tpu.memory_space<vmem>>, vector<16x8xf32>
    tpu.vector_store %arg6[%c0_43, %c8], %88 {strides = array<i32>} : memref<16x32xf32, #tpu.memory_space<vmem>>, vector<16x8xf32>,
    %90 = vector.extract_strided_slice %49 {offsets = [0, 16], sizes = [16, 8], strides = [1, 1]} : vector<16x96xf32> to vector<16x8xf32>
    %91 = vector.shape_cast %90 : vector<16x8xf32> to vector<2x8x8xf32>
    %92 = vector.extract_strided_slice %49 {offsets = [0, 48], sizes = [16, 8], strides = [1, 1]} : vector<16x96xf32> to vector<16x8xf32>
    %93 = vector.shape_cast %92 : vector<16x8xf32> to vector<2x8x8xf32>
    %94 = vector.extract_strided_slice %49 {offsets = [0, 80], sizes = [16, 8], strides = [1, 1]} : vector<16x96xf32> to vector<16x8xf32>
    %95 = vector.shape_cast %94 : vector<16x8xf32> to vector<2x8x8xf32>
    "tpu.trace_start"() <{level = 10 : i32, message = "bqd,bkd->bqk"}> : () -> ()
    %cst_44 = arith.constant dense<0.000000e+00> : vector<2x8x8xf32>
    %96 = tpu.matmul %91, %93, %cst_44 {dimension_numbers = #tpu.dot_dimension_numbers<[2], [2], [1], [1], [0, 0, 0, 1, 1, 1], [0], [0]>} : vector<2x8x8xf32>, vector<2x8x8xf32>, vector<2x8x8xf32> -> vector<2x8x8xf32>
    "tpu.trace_stop"() : () -> ()
    %cst_45 = arith.constant dense<0xFF800000> : vector<2x8xf32>
    %97 = vector.multi_reduction <maximumf>, %96, %cst_45 [2] : vector<2x8x8xf32> to vector<2x8xf32>
    %98 = vector.shape_cast %97 : vector<2x8xf32> to vector<2x8x1xf32>
    %99 = vector.broadcast %98 : vector<2x8x1xf32> to vector<2x8x8xf32>
    %100 = arith.subf %96, %99 : vector<2x8x8xf32>
    %101 = math.exp %100 : vector<2x8x8xf32>
    %cst_46 = arith.constant dense<0.000000e+00> : vector<2x8xf32>
    %102 = vector.multi_reduction <add>, %101, %cst_46 [2] : vector<2x8x8xf32> to vector<2x8xf32>
    %103 = vector.shape_cast %102 : vector<2x8xf32> to vector<2x8x1xf32>
    %104 = tpu.reciprocal %103 {approx = true} : vector<2x8x1xf32> -> vector<2x8x1xf32>
    %105 = vector.broadcast %104 : vector<2x8x1xf32> to vector<2x8x8xf32>
    %106 = arith.mulf %101, %105 : vector<2x8x8xf32>
    "tpu.trace_start"() <{level = 10 : i32, message = "bqk,bkd->bqd"}> : () -> ()
    %cst_47 = arith.constant dense<0.000000e+00> : vector<2x8x8xf32>
    %107 = tpu.matmul %106, %95, %cst_47 {dimension_numbers = #tpu.dot_dimension_numbers<[2], [1], [1], [2], [0, 0, 0, 1, 1, 2], [0], [0]>} : vector<2x8x8xf32>, vector<2x8x8xf32>, vector<2x8x8xf32> -> vector<2x8x8xf32>
    "tpu.trace_stop"() : () -> ()
    %108 = vector.shape_cast %107 : vector<2x8x8xf32> to vector<16x8xf32>
    %c0_48 = arith.constant 0 : index
    %c16 = arith.constant 16 : index
    %109 = vector.load %arg6[%c0_48, %c16] : memref<16x32xf32, #tpu.memory_space<vmem>>, vector<16x8xf32>
    tpu.vector_store %arg6[%c0_48, %c16], %108 {strides = array<i32>} : memref<16x32xf32, #tpu.memory_space<vmem>>, vector<16x8xf32>,
    %110 = vector.extract_strided_slice %49 {offsets = [0, 24], sizes = [16, 8], strides = [1, 1]} : vector<16x96xf32> to vector<16x8xf32>
    %111 = vector.shape_cast %110 : vector<16x8xf32> to vector<2x8x8xf32>
    %112 = vector.extract_strided_slice %49 {offsets = [0, 56], sizes = [16, 8], strides = [1, 1]} : vector<16x96xf32> to vector<16x8xf32>
    %113 = vector.shape_cast %112 : vector<16x8xf32> to vector<2x8x8xf32>
    %114 = vector.extract_strided_slice %49 {offsets = [0, 88], sizes = [16, 8], strides = [1, 1]} : vector<16x96xf32> to vector<16x8xf32>
    %115 = vector.shape_cast %114 : vector<16x8xf32> to vector<2x8x8xf32>
    "tpu.trace_start"() <{level = 10 : i32, message = "bqd,bkd->bqk"}> : () -> ()
    %cst_49 = arith.constant dense<0.000000e+00> : vector<2x8x8xf32>
    %116 = tpu.matmul %111, %113, %cst_49 {dimension_numbers = #tpu.dot_dimension_numbers<[2], [2], [1], [1], [0, 0, 0, 1, 1, 1], [0], [0]>} : vector<2x8x8xf32>, vector<2x8x8xf32>, vector<2x8x8xf32> -> vector<2x8x8xf32>
    "tpu.trace_stop"() : () -> ()
    %cst_50 = arith.constant dense<0xFF800000> : vector<2x8xf32>
    %117 = vector.multi_reduction <maximumf>, %116, %cst_50 [2] : vector<2x8x8xf32> to vector<2x8xf32>
    %118 = vector.shape_cast %117 : vector<2x8xf32> to vector<2x8x1xf32>
    %119 = vector.broadcast %118 : vector<2x8x1xf32> to vector<2x8x8xf32>
    %120 = arith.subf %116, %119 : vector<2x8x8xf32>
    %121 = math.exp %120 : vector<2x8x8xf32>
    %cst_51 = arith.constant dense<0.000000e+00> : vector<2x8xf32>
    %122 = vector.multi_reduction <add>, %121, %cst_51 [2] : vector<2x8x8xf32> to vector<2x8xf32>
    %123 = vector.shape_cast %122 : vector<2x8xf32> to vector<2x8x1xf32>
    %124 = tpu.reciprocal %123 {approx = true} : vector<2x8x1xf32> -> vector<2x8x1xf32>
    %125 = vector.broadcast %124 : vector<2x8x1xf32> to vector<2x8x8xf32>
    %126 = arith.mulf %121, %125 : vector<2x8x8xf32>
    "tpu.trace_start"() <{level = 10 : i32, message = "bqk,bkd->bqd"}> : () -> ()
    %cst_52 = arith.constant dense<0.000000e+00> : vector<2x8x8xf32>
    %127 = tpu.matmul %126, %115, %cst_52 {dimension_numbers = #tpu.dot_dimension_numbers<[2], [1], [1], [2], [0, 0, 0, 1, 1, 2], [0], [0]>} : vector<2x8x8xf32>, vector<2x8x8xf32>, vector<2x8x8xf32> -> vector<2x8x8xf32>
    "tpu.trace_stop"() : () -> ()
    %128 = vector.shape_cast %127 : vector<2x8x8xf32> to vector<16x8xf32>
    %c0_53 = arith.constant 0 : index
    %c24 = arith.constant 24 : index
    %129 = vector.load %arg6[%c0_53, %c24] : memref<16x32xf32, #tpu.memory_space<vmem>>, vector<16x8xf32>
    tpu.vector_store %arg6[%c0_53, %c24], %128 {strides = array<i32>} : memref<16x32xf32, #tpu.memory_space<vmem>>, vector<16x8xf32>,
    %c0_54 = arith.constant 0 : index
    %c0_55 = arith.constant 0 : index
    %130 = vector.load %arg6[%c0_54, %c0_55] : memref<16x32xf32, #tpu.memory_space<vmem>>, vector<16x32xf32>
    %cst_56 = arith.constant dense<0.000000e+00> : vector<16x32xf32>
    %131 = tpu.matmul %130, %4, %cst_56 {dimension_numbers = #tpu.dot_dimension_numbers<[1], [0], [0], [1], [0, 0, 1, 1], [], []>} : vector<16x32xf32>, vector<32x32xf32>, vector<16x32xf32> -> vector<16x32xf32>
    %132 = vector.broadcast %16 : vector<1x32xf32> to vector<16x32xf32>
    %133 = arith.addf %131, %132 : vector<16x32xf32>
    %134 = arith.addf %46, %133 : vector<16x32xf32>
    %cst_57 = arith.constant dense<0.000000e+00> : vector<16xf32>
    %135 = vector.multi_reduction <add>, %134, %cst_57 [1] : vector<16x32xf32> to vector<16xf32>
    %136 = vector.shape_cast %135 : vector<16xf32> to vector<16x1xf32>
    %cst_58 = arith.constant 3.200000e+01 : f32
    %137 = vector.broadcast %cst_58 : f32 to vector<16x1xf32>
    %138 = arith.divf %136, %137 : vector<16x1xf32>
    %139 = vector.broadcast %138 : vector<16x1xf32> to vector<16x32xf32>
    %140 = arith.subf %134, %139 : vector<16x32xf32>
    %141 = arith.mulf %140, %140 : vector<16x32xf32>
    %cst_59 = arith.constant dense<0.000000e+00> : vector<16xf32>
    %142 = vector.multi_reduction <add>, %141, %cst_59 [1] : vector<16x32xf32> to vector<16xf32>
    %143 = vector.shape_cast %142 : vector<16xf32> to vector<16x1xf32>
    %cst_60 = arith.constant 3.200000e+01 : f32
    %144 = vector.broadcast %cst_60 : f32 to vector<16x1xf32>
    %145 = arith.divf %143, %144 : vector<16x1xf32>
    %146 = vector.broadcast %138 : vector<16x1xf32> to vector<16x32xf32>
    %147 = arith.subf %134, %146 : vector<16x32xf32>
    %cst_61 = arith.constant 9.99999974E-6 : f32
    %148 = vector.broadcast %cst_61 : f32 to vector<16x1xf32>
    %149 = arith.addf %145, %148 : vector<16x1xf32>
    %150 = math.rsqrt %149 : vector<16x1xf32>
    %151 = vector.broadcast %150 : vector<16x1xf32> to vector<16x32xf32>
    %152 = arith.mulf %147, %151 : vector<16x32xf32>
    %153 = vector.broadcast %18 : vector<1x32xf32> to vector<16x32xf32>
    %154 = arith.mulf %152, %153 : vector<16x32xf32>
    %155 = vector.broadcast %20 : vector<1x32xf32> to vector<16x32xf32>
    %156 = arith.addf %154, %155 : vector<16x32xf32>
    %cst_62 = arith.constant dense<0.000000e+00> : vector<16x128xf32>
    %157 = tpu.matmul %156, %6, %cst_62 {dimension_numbers = #tpu.dot_dimension_numbers<[1], [0], [0], [1], [0, 0, 1, 1], [], []>} : vector<16x32xf32>, vector<32x128xf32>, vector<16x128xf32> -> vector<16x128xf32>
    %158 = vector.broadcast %22 : vector<1x128xf32> to vector<16x128xf32>
    %159 = arith.addf %157, %158 : vector<16x128xf32>
    %cst_63 = arith.constant 0.000000e+00 : f32
    %160 = vector.broadcast %cst_63 : f32 to vector<16x128xf32>
    %161 = arith.maximumf %159, %160 : vector<16x128xf32>
    %cst_64 = arith.constant dense<0.000000e+00> : vector<16x32xf32>
    %162 = tpu.matmul %161, %8, %cst_64 {dimension_numbers = #tpu.dot_dimension_numbers<[1], [0], [0], [1], [0, 0, 1, 1], [], []>} : vector<16x128xf32>, vector<128x32xf32>, vector<16x32xf32> -> vector<16x32xf32>
    %163 = arith.addf %134, %162 : vector<16x32xf32>
    %164 = vector.broadcast %24 : vector<1x32xf32> to vector<16x32xf32>
    %165 = arith.addf %163, %164 : vector<16x32xf32>
    %c1_65 = arith.constant 1 : index
    %c0_66 = arith.constant 0 : index
    %c0_67 = arith.constant 0 : index
    %166 = vector.load %arg1[%c1_65, %c0_66, %c0_67] : memref<2x32x256xf32, #tpu.memory_space<vmem>>, vector<1x32x96xf32>
    %167 = vector.shape_cast %166 : vector<1x32x96xf32> to vector<32x96xf32>
    %c1_68 = arith.constant 1 : index
    %c0_69 = arith.constant 0 : index
    %c96_70 = arith.constant 96 : index
    %168 = vector.load %arg1[%c1_68, %c0_69, %c96_70] : memref<2x32x256xf32, #tpu.memory_space<vmem>>, vector<1x32x32xf32>
    %169 = vector.shape_cast %168 : vector<1x32x32xf32> to vector<32x32xf32>
    %c1_71 = arith.constant 1 : index
    %c0_72 = arith.constant 0 : index
    %c128_73 = arith.constant 128 : index
    %170 = vector.load %arg1[%c1_71, %c0_72, %c128_73] : memref<2x32x256xf32, #tpu.memory_space<vmem>>, vector<1x32x128xf32>
    %171 = vector.shape_cast %170 : vector<1x32x128xf32> to vector<32x128xf32>
    %c1_74 = arith.constant 1 : index
    %c0_75 = arith.constant 0 : index
    %c0_76 = arith.constant 0 : index
    %172 = vector.load %arg2[%c1_74, %c0_75, %c0_76] : memref<2x128x32xf32, #tpu.memory_space<vmem>>, vector<1x128x32xf32>
    %173 = vector.shape_cast %172 : vector<1x128x32xf32> to vector<128x32xf32>
    %c1_77 = arith.constant 1 : index
    %c0_78 = arith.constant 0 : index
    %c0_79 = arith.constant 0 : index
    %174 = vector.load %arg3[%c1_77, %c0_78, %c0_79] : memref<2x8x128xf32, #tpu.memory_space<vmem>>, vector<1x1x32xf32>
    %175 = vector.shape_cast %174 : vector<1x1x32xf32> to vector<1x32xf32>
    %c1_80 = arith.constant 1 : index
    %c1_81 = arith.constant 1 : index
    %c0_82 = arith.constant 0 : index
    %176 = vector.load %arg3[%c1_80, %c1_81, %c0_82] : memref<2x8x128xf32, #tpu.memory_space<vmem>>, vector<1x1x32xf32>
    %177 = vector.shape_cast %176 : vector<1x1x32xf32> to vector<1x32xf32>
    %c1_83 = arith.constant 1 : index
    %c2_84 = arith.constant 2 : index
    %c0_85 = arith.constant 0 : index
    %178 = vector.load %arg3[%c1_83, %c2_84, %c0_85] : memref<2x8x128xf32, #tpu.memory_space<vmem>>, vector<1x1x96xf32>
    %179 = vector.shape_cast %178 : vector<1x1x96xf32> to vector<1x96xf32>
    %c1_86 = arith.constant 1 : index
    %c3_87 = arith.constant 3 : index
    %c0_88 = arith.constant 0 : index
    %180 = vector.load %arg3[%c1_86, %c3_87, %c0_88] : memref<2x8x128xf32, #tpu.memory_space<vmem>>, vector<1x1x32xf32>
    %181 = vector.shape_cast %180 : vector<1x1x32xf32> to vector<1x32xf32>
    %c1_89 = arith.constant 1 : index
    %c4_90 = arith.constant 4 : index
    %c0_91 = arith.constant 0 : index
    %182 = vector.load %arg3[%c1_89, %c4_90, %c0_91] : memref<2x8x128xf32, #tpu.memory_space<vmem>>, vector<1x1x32xf32>
    %183 = vector.shape_cast %182 : vector<1x1x32xf32> to vector<1x32xf32>
    %c1_92 = arith.constant 1 : index
    %c5_93 = arith.constant 5 : index
    %c0_94 = arith.constant 0 : index
    %184 = vector.load %arg3[%c1_92, %c5_93, %c0_94] : memref<2x8x128xf32, #tpu.memory_space<vmem>>, vector<1x1x32xf32>
    %185 = vector.shape_cast %184 : vector<1x1x32xf32> to vector<1x32xf32>
    %c1_95 = arith.constant 1 : index
    %c6_96 = arith.constant 6 : index
    %c0_97 = arith.constant 0 : index
    %186 = vector.load %arg3[%c1_95, %c6_96, %c0_97] : memref<2x8x128xf32, #tpu.memory_space<vmem>>, vector<1x1x128xf32>
    %187 = vector.shape_cast %186 : vector<1x1x128xf32> to vector<1x128xf32>
    %c1_98 = arith.constant 1 : index
    %c7_99 = arith.constant 7 : index
    %c0_100 = arith.constant 0 : index
    %188 = vector.load %arg3[%c1_98, %c7_99, %c0_100] : memref<2x8x128xf32, #tpu.memory_space<vmem>>, vector<1x1x32xf32>
    %189 = vector.shape_cast %188 : vector<1x1x32xf32> to vector<1x32xf32>
    %cst_101 = arith.constant dense<0.000000e+00> : vector<16xf32>
    %190 = vector.multi_reduction <add>, %165, %cst_101 [1] : vector<16x32xf32> to vector<16xf32>
    %191 = vector.shape_cast %190 : vector<16xf32> to vector<16x1xf32>
    %cst_102 = arith.constant 3.200000e+01 : f32
    %192 = vector.broadcast %cst_102 : f32 to vector<16x1xf32>
    %193 = arith.divf %191, %192 : vector<16x1xf32>
    %194 = vector.broadcast %193 : vector<16x1xf32> to vector<16x32xf32>
    %195 = arith.subf %165, %194 : vector<16x32xf32>
    %196 = arith.mulf %195, %195 : vector<16x32xf32>
    %cst_103 = arith.constant dense<0.000000e+00> : vector<16xf32>
    %197 = vector.multi_reduction <add>, %196, %cst_103 [1] : vector<16x32xf32> to vector<16xf32>
    %198 = vector.shape_cast %197 : vector<16xf32> to vector<16x1xf32>
    %cst_104 = arith.constant 3.200000e+01 : f32
    %199 = vector.broadcast %cst_104 : f32 to vector<16x1xf32>
    %200 = arith.divf %198, %199 : vector<16x1xf32>
    %201 = vector.broadcast %193 : vector<16x1xf32> to vector<16x32xf32>
    %202 = arith.subf %165, %201 : vector<16x32xf32>
    %cst_105 = arith.constant 9.99999974E-6 : f32
    %203 = vector.broadcast %cst_105 : f32 to vector<16x1xf32>
    %204 = arith.addf %200, %203 : vector<16x1xf32>
    %205 = math.rsqrt %204 : vector<16x1xf32>
    %206 = vector.broadcast %205 : vector<16x1xf32> to vector<16x32xf32>
    %207 = arith.mulf %202, %206 : vector<16x32xf32>
    %208 = vector.broadcast %175 : vector<1x32xf32> to vector<16x32xf32>
    %209 = arith.mulf %207, %208 : vector<16x32xf32>
    %210 = vector.broadcast %177 : vector<1x32xf32> to vector<16x32xf32>
    %211 = arith.addf %209, %210 : vector<16x32xf32>
    %cst_106 = arith.constant dense<0.000000e+00> : vector<16x96xf32>
    %212 = tpu.matmul %211, %167, %cst_106 {dimension_numbers = #tpu.dot_dimension_numbers<[1], [0], [0], [1], [0, 0, 1, 1], [], []>} : vector<16x32xf32>, vector<32x96xf32>, vector<16x96xf32> -> vector<16x96xf32>
    %213 = vector.broadcast %179 : vector<1x96xf32> to vector<16x96xf32>
    %214 = arith.addf %212, %213 : vector<16x96xf32>
    %215 = vector.extract_strided_slice %214 {offsets = [0, 0], sizes = [16, 8], strides = [1, 1]} : vector<16x96xf32> to vector<16x8xf32>
    %216 = vector.shape_cast %215 : vector<16x8xf32> to vector<2x8x8xf32>
    %217 = vector.extract_strided_slice %214 {offsets = [0, 32], sizes = [16, 8], strides = [1, 1]} : vector<16x96xf32> to vector<16x8xf32>
    %218 = vector.shape_cast %217 : vector<16x8xf32> to vector<2x8x8xf32>
    %219 = vector.extract_strided_slice %214 {offsets = [0, 64], sizes = [16, 8], strides = [1, 1]} : vector<16x96xf32> to vector<16x8xf32>
    %220 = vector.shape_cast %219 : vector<16x8xf32> to vector<2x8x8xf32>
    "tpu.trace_start"() <{level = 10 : i32, message = "bqd,bkd->bqk"}> : () -> ()
    %cst_107 = arith.constant dense<0.000000e+00> : vector<2x8x8xf32>
    %221 = tpu.matmul %216, %218, %cst_107 {dimension_numbers = #tpu.dot_dimension_numbers<[2], [2], [1], [1], [0, 0, 0, 1, 1, 1], [0], [0]>} : vector<2x8x8xf32>, vector<2x8x8xf32>, vector<2x8x8xf32> -> vector<2x8x8xf32>
    "tpu.trace_stop"() : () -> ()
    %cst_108 = arith.constant dense<0xFF800000> : vector<2x8xf32>
    %222 = vector.multi_reduction <maximumf>, %221, %cst_108 [2] : vector<2x8x8xf32> to vector<2x8xf32>
    %223 = vector.shape_cast %222 : vector<2x8xf32> to vector<2x8x1xf32>
    %224 = vector.broadcast %223 : vector<2x8x1xf32> to vector<2x8x8xf32>
    %225 = arith.subf %221, %224 : vector<2x8x8xf32>
    %226 = math.exp %225 : vector<2x8x8xf32>
    %cst_109 = arith.constant dense<0.000000e+00> : vector<2x8xf32>
    %227 = vector.multi_reduction <add>, %226, %cst_109 [2] : vector<2x8x8xf32> to vector<2x8xf32>
    %228 = vector.shape_cast %227 : vector<2x8xf32> to vector<2x8x1xf32>
    %229 = tpu.reciprocal %228 {approx = true} : vector<2x8x1xf32> -> vector<2x8x1xf32>
    %230 = vector.broadcast %229 : vector<2x8x1xf32> to vector<2x8x8xf32>
    %231 = arith.mulf %226, %230 : vector<2x8x8xf32>
    "tpu.trace_start"() <{level = 10 : i32, message = "bqk,bkd->bqd"}> : () -> ()
    %cst_110 = arith.constant dense<0.000000e+00> : vector<2x8x8xf32>
    %232 = tpu.matmul %231, %220, %cst_110 {dimension_numbers = #tpu.dot_dimension_numbers<[2], [1], [1], [2], [0, 0, 0, 1, 1, 2], [0], [0]>} : vector<2x8x8xf32>, vector<2x8x8xf32>, vector<2x8x8xf32> -> vector<2x8x8xf32>
    "tpu.trace_stop"() : () -> ()
    %233 = vector.shape_cast %232 : vector<2x8x8xf32> to vector<16x8xf32>
    %c0_111 = arith.constant 0 : index
    %c0_112 = arith.constant 0 : index
    %234 = vector.load %arg6[%c0_111, %c0_112] : memref<16x32xf32, #tpu.memory_space<vmem>>, vector<16x8xf32>
    tpu.vector_store %arg6[%c0_111, %c0_112], %233 {strides = array<i32>} : memref<16x32xf32, #tpu.memory_space<vmem>>, vector<16x8xf32>,
    %235 = vector.extract_strided_slice %214 {offsets = [0, 8], sizes = [16, 8], strides = [1, 1]} : vector<16x96xf32> to vector<16x8xf32>
    %236 = vector.shape_cast %235 : vector<16x8xf32> to vector<2x8x8xf32>
    %237 = vector.extract_strided_slice %214 {offsets = [0, 40], sizes = [16, 8], strides = [1, 1]} : vector<16x96xf32> to vector<16x8xf32>
    %238 = vector.shape_cast %237 : vector<16x8xf32> to vector<2x8x8xf32>
    %239 = vector.extract_strided_slice %214 {offsets = [0, 72], sizes = [16, 8], strides = [1, 1]} : vector<16x96xf32> to vector<16x8xf32>
    %240 = vector.shape_cast %239 : vector<16x8xf32> to vector<2x8x8xf32>
    "tpu.trace_start"() <{level = 10 : i32, message = "bqd,bkd->bqk"}> : () -> ()
    %cst_113 = arith.constant dense<0.000000e+00> : vector<2x8x8xf32>
    %241 = tpu.matmul %236, %238, %cst_113 {dimension_numbers = #tpu.dot_dimension_numbers<[2], [2], [1], [1], [0, 0, 0, 1, 1, 1], [0], [0]>} : vector<2x8x8xf32>, vector<2x8x8xf32>, vector<2x8x8xf32> -> vector<2x8x8xf32>
    "tpu.trace_stop"() : () -> ()
    %cst_114 = arith.constant dense<0xFF800000> : vector<2x8xf32>
    %242 = vector.multi_reduction <maximumf>, %241, %cst_114 [2] : vector<2x8x8xf32> to vector<2x8xf32>
    %243 = vector.shape_cast %242 : vector<2x8xf32> to vector<2x8x1xf32>
    %244 = vector.broadcast %243 : vector<2x8x1xf32> to vector<2x8x8xf32>
    %245 = arith.subf %241, %244 : vector<2x8x8xf32>
    %246 = math.exp %245 : vector<2x8x8xf32>
    %cst_115 = arith.constant dense<0.000000e+00> : vector<2x8xf32>
    %247 = vector.multi_reduction <add>, %246, %cst_115 [2] : vector<2x8x8xf32> to vector<2x8xf32>
    %248 = vector.shape_cast %247 : vector<2x8xf32> to vector<2x8x1xf32>
    %249 = tpu.reciprocal %248 {approx = true} : vector<2x8x1xf32> -> vector<2x8x1xf32>
    %250 = vector.broadcast %249 : vector<2x8x1xf32> to vector<2x8x8xf32>
    %251 = arith.mulf %246, %250 : vector<2x8x8xf32>
    "tpu.trace_start"() <{level = 10 : i32, message = "bqk,bkd->bqd"}> : () -> ()
    %cst_116 = arith.constant dense<0.000000e+00> : vector<2x8x8xf32>
    %252 = tpu.matmul %251, %240, %cst_116 {dimension_numbers = #tpu.dot_dimension_numbers<[2], [1], [1], [2], [0, 0, 0, 1, 1, 2], [0], [0]>} : vector<2x8x8xf32>, vector<2x8x8xf32>, vector<2x8x8xf32> -> vector<2x8x8xf32>
    "tpu.trace_stop"() : () -> ()
    %253 = vector.shape_cast %252 : vector<2x8x8xf32> to vector<16x8xf32>
    %c0_117 = arith.constant 0 : index
    %c8_118 = arith.constant 8 : index
    %254 = vector.load %arg6[%c0_117, %c8_118] : memref<16x32xf32, #tpu.memory_space<vmem>>, vector<16x8xf32>
    tpu.vector_store %arg6[%c0_117, %c8_118], %253 {strides = array<i32>} : memref<16x32xf32, #tpu.memory_space<vmem>>, vector<16x8xf32>,
    %255 = vector.extract_strided_slice %214 {offsets = [0, 16], sizes = [16, 8], strides = [1, 1]} : vector<16x96xf32> to vector<16x8xf32>
    %256 = vector.shape_cast %255 : vector<16x8xf32> to vector<2x8x8xf32>
    %257 = vector.extract_strided_slice %214 {offsets = [0, 48], sizes = [16, 8], strides = [1, 1]} : vector<16x96xf32> to vector<16x8xf32>
    %258 = vector.shape_cast %257 : vector<16x8xf32> to vector<2x8x8xf32>
    %259 = vector.extract_strided_slice %214 {offsets = [0, 80], sizes = [16, 8], strides = [1, 1]} : vector<16x96xf32> to vector<16x8xf32>
    %260 = vector.shape_cast %259 : vector<16x8xf32> to vector<2x8x8xf32>
    "tpu.trace_start"() <{level = 10 : i32, message = "bqd,bkd->bqk"}> : () -> ()
    %cst_119 = arith.constant dense<0.000000e+00> : vector<2x8x8xf32>
    %261 = tpu.matmul %256, %258, %cst_119 {dimension_numbers = #tpu.dot_dimension_numbers<[2], [2], [1], [1], [0, 0, 0, 1, 1, 1], [0], [0]>} : vector<2x8x8xf32>, vector<2x8x8xf32>, vector<2x8x8xf32> -> vector<2x8x8xf32>
    "tpu.trace_stop"() : () -> ()
    %cst_120 = arith.constant dense<0xFF800000> : vector<2x8xf32>
    %262 = vector.multi_reduction <maximumf>, %261, %cst_120 [2] : vector<2x8x8xf32> to vector<2x8xf32>
    %263 = vector.shape_cast %262 : vector<2x8xf32> to vector<2x8x1xf32>
    %264 = vector.broadcast %263 : vector<2x8x1xf32> to vector<2x8x8xf32>
    %265 = arith.subf %261, %264 : vector<2x8x8xf32>
    %266 = math.exp %265 : vector<2x8x8xf32>
    %cst_121 = arith.constant dense<0.000000e+00> : vector<2x8xf32>
    %267 = vector.multi_reduction <add>, %266, %cst_121 [2] : vector<2x8x8xf32> to vector<2x8xf32>
    %268 = vector.shape_cast %267 : vector<2x8xf32> to vector<2x8x1xf32>
    %269 = tpu.reciprocal %268 {approx = true} : vector<2x8x1xf32> -> vector<2x8x1xf32>
    %270 = vector.broadcast %269 : vector<2x8x1xf32> to vector<2x8x8xf32>
    %271 = arith.mulf %266, %270 : vector<2x8x8xf32>
    "tpu.trace_start"() <{level = 10 : i32, message = "bqk,bkd->bqd"}> : () -> ()
    %cst_122 = arith.constant dense<0.000000e+00> : vector<2x8x8xf32>
    %272 = tpu.matmul %271, %260, %cst_122 {dimension_numbers = #tpu.dot_dimension_numbers<[2], [1], [1], [2], [0, 0, 0, 1, 1, 2], [0], [0]>} : vector<2x8x8xf32>, vector<2x8x8xf32>, vector<2x8x8xf32> -> vector<2x8x8xf32>
    "tpu.trace_stop"() : () -> ()
    %273 = vector.shape_cast %272 : vector<2x8x8xf32> to vector<16x8xf32>
    %c0_123 = arith.constant 0 : index
    %c16_124 = arith.constant 16 : index
    %274 = vector.load %arg6[%c0_123, %c16_124] : memref<16x32xf32, #tpu.memory_space<vmem>>, vector<16x8xf32>
    tpu.vector_store %arg6[%c0_123, %c16_124], %273 {strides = array<i32>} : memref<16x32xf32, #tpu.memory_space<vmem>>, vector<16x8xf32>,
    %275 = vector.extract_strided_slice %214 {offsets = [0, 24], sizes = [16, 8], strides = [1, 1]} : vector<16x96xf32> to vector<16x8xf32>
    %276 = vector.shape_cast %275 : vector<16x8xf32> to vector<2x8x8xf32>
    %277 = vector.extract_strided_slice %214 {offsets = [0, 56], sizes = [16, 8], strides = [1, 1]} : vector<16x96xf32> to vector<16x8xf32>
    %278 = vector.shape_cast %277 : vector<16x8xf32> to vector<2x8x8xf32>
    %279 = vector.extract_strided_slice %214 {offsets = [0, 88], sizes = [16, 8], strides = [1, 1]} : vector<16x96xf32> to vector<16x8xf32>
    %280 = vector.shape_cast %279 : vector<16x8xf32> to vector<2x8x8xf32>
    "tpu.trace_start"() <{level = 10 : i32, message = "bqd,bkd->bqk"}> : () -> ()
    %cst_125 = arith.constant dense<0.000000e+00> : vector<2x8x8xf32>
    %281 = tpu.matmul %276, %278, %cst_125 {dimension_numbers = #tpu.dot_dimension_numbers<[2], [2], [1], [1], [0, 0, 0, 1, 1, 1], [0], [0]>} : vector<2x8x8xf32>, vector<2x8x8xf32>, vector<2x8x8xf32> -> vector<2x8x8xf32>
    "tpu.trace_stop"() : () -> ()
    %cst_126 = arith.constant dense<0xFF800000> : vector<2x8xf32>
    %282 = vector.multi_reduction <maximumf>, %281, %cst_126 [2] : vector<2x8x8xf32> to vector<2x8xf32>
    %283 = vector.shape_cast %282 : vector<2x8xf32> to vector<2x8x1xf32>
    %284 = vector.broadcast %283 : vector<2x8x1xf32> to vector<2x8x8xf32>
    %285 = arith.subf %281, %284 : vector<2x8x8xf32>
    %286 = math.exp %285 : vector<2x8x8xf32>
    %cst_127 = arith.constant dense<0.000000e+00> : vector<2x8xf32>
    %287 = vector.multi_reduction <add>, %286, %cst_127 [2] : vector<2x8x8xf32> to vector<2x8xf32>
    %288 = vector.shape_cast %287 : vector<2x8xf32> to vector<2x8x1xf32>
    %289 = tpu.reciprocal %288 {approx = true} : vector<2x8x1xf32> -> vector<2x8x1xf32>
    %290 = vector.broadcast %289 : vector<2x8x1xf32> to vector<2x8x8xf32>
    %291 = arith.mulf %286, %290 : vector<2x8x8xf32>
    "tpu.trace_start"() <{level = 10 : i32, message = "bqk,bkd->bqd"}> : () -> ()
    %cst_128 = arith.constant dense<0.000000e+00> : vector<2x8x8xf32>
    %292 = tpu.matmul %291, %280, %cst_128 {dimension_numbers = #tpu.dot_dimension_numbers<[2], [1], [1], [2], [0, 0, 0, 1, 1, 2], [0], [0]>} : vector<2x8x8xf32>, vector<2x8x8xf32>, vector<2x8x8xf32> -> vector<2x8x8xf32>
    "tpu.trace_stop"() : () -> ()
    %293 = vector.shape_cast %292 : vector<2x8x8xf32> to vector<16x8xf32>
    %c0_129 = arith.constant 0 : index
    %c24_130 = arith.constant 24 : index
    %294 = vector.load %arg6[%c0_129, %c24_130] : memref<16x32xf32, #tpu.memory_space<vmem>>, vector<16x8xf32>
    tpu.vector_store %arg6[%c0_129, %c24_130], %293 {strides = array<i32>} : memref<16x32xf32, #tpu.memory_space<vmem>>, vector<16x8xf32>,
    %c0_131 = arith.constant 0 : index
    %c0_132 = arith.constant 0 : index
    %295 = vector.load %arg6[%c0_131, %c0_132] : memref<16x32xf32, #tpu.memory_space<vmem>>, vector<16x32xf32>
    %cst_133 = arith.constant dense<0.000000e+00> : vector<16x32xf32>
    %296 = tpu.matmul %295, %169, %cst_133 {dimension_numbers = #tpu.dot_dimension_numbers<[1], [0], [0], [1], [0, 0, 1, 1], [], []>} : vector<16x32xf32>, vector<32x32xf32>, vector<16x32xf32> -> vector<16x32xf32>
    %297 = vector.broadcast %181 : vector<1x32xf32> to vector<16x32xf32>
    %298 = arith.addf %296, %297 : vector<16x32xf32>
    %299 = arith.addf %211, %298 : vector<16x32xf32>
    %cst_134 = arith.constant dense<0.000000e+00> : vector<16xf32>
    %300 = vector.multi_reduction <add>, %299, %cst_134 [1] : vector<16x32xf32> to vector<16xf32>
    %301 = vector.shape_cast %300 : vector<16xf32> to vector<16x1xf32>
    %cst_135 = arith.constant 3.200000e+01 : f32
    %302 = vector.broadcast %cst_135 : f32 to vector<16x1xf32>
    %303 = arith.divf %301, %302 : vector<16x1xf32>
    %304 = vector.broadcast %303 : vector<16x1xf32> to vector<16x32xf32>
    %305 = arith.subf %299, %304 : vector<16x32xf32>
    %306 = arith.mulf %305, %305 : vector<16x32xf32>
    %cst_136 = arith.constant dense<0.000000e+00> : vector<16xf32>
    %307 = vector.multi_reduction <add>, %306, %cst_136 [1] : vector<16x32xf32> to vector<16xf32>
    %308 = vector.shape_cast %307 : vector<16xf32> to vector<16x1xf32>
    %cst_137 = arith.constant 3.200000e+01 : f32
    %309 = vector.broadcast %cst_137 : f32 to vector<16x1xf32>
    %310 = arith.divf %308, %309 : vector<16x1xf32>
    %311 = vector.broadcast %303 : vector<16x1xf32> to vector<16x32xf32>
    %312 = arith.subf %299, %311 : vector<16x32xf32>
    %cst_138 = arith.constant 9.99999974E-6 : f32
    %313 = vector.broadcast %cst_138 : f32 to vector<16x1xf32>
    %314 = arith.addf %310, %313 : vector<16x1xf32>
    %315 = math.rsqrt %314 : vector<16x1xf32>
    %316 = vector.broadcast %315 : vector<16x1xf32> to vector<16x32xf32>
    %317 = arith.mulf %312, %316 : vector<16x32xf32>
    %318 = vector.broadcast %183 : vector<1x32xf32> to vector<16x32xf32>
    %319 = arith.mulf %317, %318 : vector<16x32xf32>
    %320 = vector.broadcast %185 : vector<1x32xf32> to vector<16x32xf32>
    %321 = arith.addf %319, %320 : vector<16x32xf32>
    %cst_139 = arith.constant dense<0.000000e+00> : vector<16x128xf32>
    %322 = tpu.matmul %321, %171, %cst_139 {dimension_numbers = #tpu.dot_dimension_numbers<[1], [0], [0], [1], [0, 0, 1, 1], [], []>} : vector<16x32xf32>, vector<32x128xf32>, vector<16x128xf32> -> vector<16x128xf32>
    %323 = vector.broadcast %187 : vector<1x128xf32> to vector<16x128xf32>
    %324 = arith.addf %322, %323 : vector<16x128xf32>
    %cst_140 = arith.constant 0.000000e+00 : f32
    %325 = vector.broadcast %cst_140 : f32 to vector<16x128xf32>
    %326 = arith.maximumf %324, %325 : vector<16x128xf32>
    %cst_141 = arith.constant dense<0.000000e+00> : vector<16x32xf32>
    %327 = tpu.matmul %326, %173, %cst_141 {dimension_numbers = #tpu.dot_dimension_numbers<[1], [0], [0], [1], [0, 0, 1, 1], [], []>} : vector<16x128xf32>, vector<128x32xf32>, vector<16x32xf32> -> vector<16x32xf32>
    %328 = arith.addf %299, %327 : vector<16x32xf32>
    %329 = vector.broadcast %189 : vector<1x32xf32> to vector<16x32xf32>
    %330 = arith.addf %328, %329 : vector<16x32xf32>
    %c0_142 = arith.constant 0 : index
    %c0_143 = arith.constant 0 : index
    %331 = vector.load %arg4[%c0_142, %c0_143] : memref<2x32xf32, #tpu.memory_space<vmem>>, vector<1x32xf32>
    %c1_144 = arith.constant 1 : index
    %c0_145 = arith.constant 0 : index
    %332 = vector.load %arg4[%c1_144, %c0_145] : memref<2x32xf32, #tpu.memory_space<vmem>>, vector<1x32xf32>
    %cst_146 = arith.constant dense<0.000000e+00> : vector<16xf32>
    %333 = vector.multi_reduction <add>, %330, %cst_146 [1] : vector<16x32xf32> to vector<16xf32>
    %334 = vector.shape_cast %333 : vector<16xf32> to vector<16x1xf32>
    %cst_147 = arith.constant 3.200000e+01 : f32
    %335 = vector.broadcast %cst_147 : f32 to vector<16x1xf32>
    %336 = arith.divf %334, %335 : vector<16x1xf32>
    %337 = vector.broadcast %336 : vector<16x1xf32> to vector<16x32xf32>
    %338 = arith.subf %330, %337 : vector<16x32xf32>
    %339 = arith.mulf %338, %338 : vector<16x32xf32>
    %cst_148 = arith.constant dense<0.000000e+00> : vector<16xf32>
    %340 = vector.multi_reduction <add>, %339, %cst_148 [1] : vector<16x32xf32> to vector<16xf32>
    %341 = vector.shape_cast %340 : vector<16xf32> to vector<16x1xf32>
    %cst_149 = arith.constant 3.200000e+01 : f32
    %342 = vector.broadcast %cst_149 : f32 to vector<16x1xf32>
    %343 = arith.divf %341, %342 : vector<16x1xf32>
    %344 = vector.broadcast %336 : vector<16x1xf32> to vector<16x32xf32>
    %345 = arith.subf %330, %344 : vector<16x32xf32>
    %cst_150 = arith.constant 9.99999974E-6 : f32
    %346 = vector.broadcast %cst_150 : f32 to vector<16x1xf32>
    %347 = arith.addf %343, %346 : vector<16x1xf32>
    %348 = math.rsqrt %347 : vector<16x1xf32>
    %349 = vector.broadcast %348 : vector<16x1xf32> to vector<16x32xf32>
    %350 = arith.mulf %345, %349 : vector<16x32xf32>
    %351 = vector.broadcast %331 : vector<1x32xf32> to vector<16x32xf32>
    %352 = arith.mulf %350, %351 : vector<16x32xf32>
    %353 = vector.broadcast %332 : vector<1x32xf32> to vector<16x32xf32>
    %354 = arith.addf %352, %353 : vector<16x32xf32>
    %c0_151 = arith.constant 0 : index
    %c0_152 = arith.constant 0 : index
    %355 = vector.load %arg5[%c0_151, %c0_152] : memref<16x32xf32, #tpu.memory_space<vmem>>, vector<16x32xf32>
    tpu.vector_store %arg5[%c0_151, %c0_152], %354 {strides = array<i32>} : memref<16x32xf32, #tpu.memory_space<vmem>>, vector<16x32xf32>,
    return
  }
}

</mosaic_0001>

<llo_original>
// kernel: encoder_forward.1
$region0: #{encoder_forward.1}
  #allocation0 [shape = 'u32[]', space=smem, size = 0x4, offset = 0x4, fixed_abs, tag = 'smem constant byte address 0x4 - core index']
  #allocation1 [shape = 'u32[72,128]{1,0:T(1,128)}', space=vmem, size = 0x9000, scoped, tag = 'internal scratch']
  #allocation2 [shape = 'f32[16,32]{1,0:T(8,128)}', space=vmem, size = 0x2000, scoped, tag = 'scratch operand']
  %s0 = inlined_call_operand.vmem [shape: f32[16,32], index: 0, kind: input, shape index: {}]
  %s1 = inlined_call_operand.vmem [shape: f32[2,32,256], index: 1, kind: input, shape index: {}]
  %s2 = inlined_call_operand.vmem [shape: f32[2,128,32], index: 2, kind: input, shape index: {}]
  %s3 = inlined_call_operand.vmem [shape: f32[2,8,128], index: 3, kind: input, shape index: {}]
  %s4 = inlined_call_operand.vmem [shape: f32[2,32], index: 4, kind: input, shape index: {}]
  %s5 = inlined_call_operand.hbm [shape: f32[16,32], index: 5, kind: output, shape index: {}]
  %s6 = sld [smem:[#allocation0]]
  $region30: #{encoder_forward.1} parent=0
    _
  %s8 = ssub.s32 1, %s6
  %s9 = scalar_select 0, %s8, %s6
  $region1: #{encoder_forward.1} parent=0
    #allocation3 [shape = 'u8[8192]{0}', space=vmem, size = 0x2000, scoped, tag = 'output window, operand 0, single buffered']
    #allocation4 [shape = 's32[1]{0}', space=sflag, size = 0x4, scoped, tag = 'scoped memory for encoder_forward.1']
    %10 = vsyncpa [#allocation4], 0
    // Predicated region
    $region2: #{encoder_forward.1} parent=1 // pred_check
      _
    $region3: #{encoder_forward.1} parent=1 // pred_check_branch
      %12 = sbr.rel (0) target = $region5
    $region4: #{encoder_forward.1} parent=1 // pred_region
      _
    $region5: #{encoder_forward.1} parent=1 // pred_fallthru
      _
    // Predicated region
    $region6: #{encoder_forward.1} parent=1 // pred_check
      _
    $region7: #{encoder_forward.1} parent=1 // pred_check_branch
      %14 = sbr.rel (0) target = $region9
    $region8: #{encoder_forward.1} parent=1 // pred_region
      _
    $region9: #{encoder_forward.1} parent=1 // pred_fallthru
      _
    // Predicated region
    $region10: #{encoder_forward.1} parent=1 // pred_check
      _
    $region11: #{encoder_forward.1} parent=1 // pred_check_branch
      %16 = sbr.rel (0) target = $region13
    $region12: #{encoder_forward.1} parent=1 // pred_region
      _
    $region13: #{encoder_forward.1} parent=1 // pred_fallthru
      _
    // Predicated region
    $region14: #{encoder_forward.1} parent=1 // pred_check
      _
    $region15: #{encoder_forward.1} parent=1 // pred_check_branch
      %18 = sbr.rel (0) target = $region17
    $region16: #{encoder_forward.1} parent=1 // pred_region
      _
    $region17: #{encoder_forward.1} parent=1 // pred_fallthru
      _
    // Predicated region
    $region18: #{encoder_forward.1} parent=1 // pred_check
      _
    $region19: #{encoder_forward.1} parent=1 // pred_check_branch
      %20 = sbr.rel (0) target = $region21
    $region20: #{encoder_forward.1} parent=1 // pred_region
      _
    $region21: #{encoder_forward.1} parent=1 // pred_fallthru
      _
    %v21 = vld [vmem:[%s0] sm:$0xff]
    %v22 = vld [vmem:[%s0 + $0x8] sm:$0xff]
    %v23 = vld [vmem:[%s1] sm:$0xff]
    %v24 = vld [vmem:[%s1 + $0x10] sm:$0xff]
    %v25 = vld [vmem:[%s1 + $0x20] sm:$0xff]
    %v26 = vld [vmem:[%s1 + $0x30] sm:$0xff]
    %v27 = vld [vmem:[%s1 + $0x8] sm:$0xff]
    %v28 = vld [vmem:[%s1 + $0x18] sm:$0xff]
    %v29 = vld [vmem:[%s1 + $0x28] sm:$0xff]
    %v30 = vld [vmem:[%s1 + $0x38] sm:$0xff]
    %v31 = vld [vmem:[%s2] sm:$0xff]
    %v32 = vld [vmem:[%s2 + $0x8] sm:$0xff]
    %v33 = vld [vmem:[%s2 + $0x10] sm:$0xff]
    %v34 = vld [vmem:[%s2 + $0x18] sm:$0xff]
    %v35 = vld [vmem:[%s2 + $0x20] sm:$0xff]
    %v36 = vld [vmem:[%s2 + $0x28] sm:$0xff]
    %v37 = vld [vmem:[%s2 + $0x30] sm:$0xff]
    %v38 = vld [vmem:[%s2 + $0x38] sm:$0xff]
    %v39 = vld [vmem:[%s2 + $0x40] sm:$0xff]
    %v40 = vld [vmem:[%s2 + $0x48] sm:$0xff]
    %v41 = vld [vmem:[%s2 + $0x50] sm:$0xff]
    %v42 = vld [vmem:[%s2 + $0x58] sm:$0xff]
    %v43 = vld [vmem:[%s2 + $0x60] sm:$0xff]
    %v44 = vld [vmem:[%s2 + $0x68] sm:$0xff]
    %v45 = vld [vmem:[%s2 + $0x70] sm:$0xff]
    %v46 = vld [vmem:[%s2 + $0x78] sm:$0xff]
    %v47 = vld [vmem:[%s3] sm:$0x1]
    %v48 = vld [vmem:[%s3 + $0x1] sm:$0x1]
    %v49 = vld [vmem:[%s3 + $0x2] sm:$0x1]
    %v50 = vld [vmem:[%s3 + $0x3] sm:$0x1]
    %v51 = vld [vmem:[%s3 + $0x4] sm:$0x1]
    %v52 = vld [vmem:[%s3 + $0x5] sm:$0x1]
    %v53 = vld [vmem:[%s3 + $0x6] sm:$0x1]
    %v54 = vld [vmem:[%s3 + $0x7] sm:$0x1]
    %vm55 = vcmask 261120
    %v56 = vsel %vm55, %v21, 0.0
    %57 = vadd.xlane.f32.xlu0 %v56
    %v58 = vpop.xlane.xlu0 %57
    %v59 = vsel %vm55, %v22, 0.0
    %60 = vadd.xlane.f32.xlu0 %v59
    %v61 = vpop.xlane.xlu0 %60
    %v62 = vrcp.pop 32.0
    %v63 = vmul.f32 32.0, %v62
    %v64 = vsub.f32 1.0, %v63
    %v65 = vmul.f32 %v62, %v64
    %v66 = vadd.f32 %v62, %v65
    %vm67 = vweird.f32 %v62
    %v68 = vsel %vm67, %v62, %v66
    %v69 = vmul.f32 %v58, %v68
    %v70 = vmul.f32 %v61, %v68
    %v71 = vsub.f32 %v21, %v69
    %v72 = vsub.f32 %v22, %v70
    %v73 = vmul.f32 %v71, %v71
    %v74 = vmul.f32 %v72, %v72
    %v75 = vsel %vm55, %v73, 0.0
    %76 = vadd.xlane.f32.xlu0 %v75
    %v77 = vpop.xlane.xlu0 %76
    %v78 = vsel %vm55, %v74, 0.0
    %79 = vadd.xlane.f32.xlu0 %v78
    %v80 = vpop.xlane.xlu0 %79
    %v81 = vmul.f32 %v77, %v68
    %v82 = vmul.f32 %v80, %v68
    %v83 = vadd.f32 %v81, 1e-05
    %v84 = vadd.f32 %v82, 1e-05
    %v85 = vrsqrt.pop %v83
    %v86 = vmul.f32 %v85, %v83
    %v87 = vmul.f32 %v86, %v85
    %v88 = vmul.f32 0.5, %v87
    %v89 = vsub.f32 1.5, %v88
    %v90 = vmul.f32 %v85, %v89
    %vm91 = vweird.f32 %v83
    %vm92 = vweird.f32 %v85
    %vm93 = vmor %vm91, %vm92
    %v94 = vsel %vm93, %v85, %v90
    %v95 = vrsqrt.pop %v84
    %v96 = vmul.f32 %v95, %v84
    %v97 = vmul.f32 %v96, %v95
    %v98 = vmul.f32 0.5, %v97
    %v99 = vsub.f32 1.5, %v98
    %v100 = vmul.f32 %v95, %v99
    %vm101 = vweird.f32 %v84
    %vm102 = vweird.f32 %v95
    %vm103 = vmor %vm101, %vm102
    %v104 = vsel %vm103, %v95, %v100
    %v105 = vmul.f32 %v71, %v94
    %v106 = vmul.f32 %v72, %v104
    %v107 = vperm.slane %v47, 0
    %v108 = vmul.f32 %v105, %v107
    %v109 = vmul.f32 %v106, %v107
    %v110 = vperm.slane %v48, 0
    %v111 = vadd.f32 %v108, %v110
    %v112 = vadd.f32 %v109, %v110
    %v113 = vperm.slane %v49, 0
    %v115 = vsel %vm55, %v111, 0
    %v118 = vsel %vm55, %v112, 0
    %120 = vmatpush.msra.mxu0 0.0
    %121 = vmatpush.msra.mxu0 0.0
    %122 = vmatpush.msra.mxu0 0.0
    %123 = vmatpush.msra.mxu0 0.0
    %124 = vmatpush.msra.mxu0 0.0
    %125 = vmatpush.msra.mxu0 0.0
    %126 = vmatpush.msra.mxu0 0.0
    %127 = vmatpush.msra.mxu0 0.0
    %128 = vmatpush.msra.mxu0 0.0
    %129 = vmatpush.msra.mxu0 0.0
    %130 = vmatpush.msra.mxu0 0.0
    %131 = vmatpush.msra.mxu0 0.0
    %132 = vmatpush.msra.mxu0 %v26
    %133 = vmatpush.msra.mxu0 %v25
    %134 = vmatpush.msra.mxu0 %v24
    %135 = vmatpush.msra.mxu0 %v23
    %136 = vmatmul.f32.gmra.mxu0 %v115
    %v137 = vpop.f32.mrf.mxu0
    %v138 = vadd.f32 %v113, %v137
    %139 = vmatmul.f32.gmra.mxu0 %v118
    %v140 = vpop.f32.mrf.mxu0
    %v141 = vadd.f32 %v113, %v140
    %142 = vdwg.mxu0
    %144 = vrot.lane.b32.xlu0 %v138, 96
    %v145 = vpop.permute.xlu0 %144
    %vm146 = vcmask 64512
    %v147 = vsel %vm146, %v138, 0
    %v149 = vsel %vm146, %v145, 0
    %151 = vmatpush.xpose.msra.mxu0 0.0
    %152 = vmatpush.xpose.msra.mxu0 0.0
    %153 = vmatpush.xpose.msra.mxu0 0.0
    %154 = vmatpush.xpose.msra.mxu0 0.0
    %155 = vmatpush.xpose.msra.mxu0 0.0
    %156 = vmatpush.xpose.msra.mxu0 0.0
    %157 = vmatpush.xpose.msra.mxu0 0.0
    %158 = vmatpush.xpose.msra.mxu0 0.0
    %159 = vmatpush.xpose.msra.mxu0 0.0
    %160 = vmatpush.xpose.msra.mxu0 0.0
    %161 = vmatpush.xpose.msra.mxu0 0.0
    %162 = vmatpush.xpose.msra.mxu0 0.0
    %163 = vmatpush.xpose.msra.mxu0 0.0
    %164 = vmatpush.xpose.msra.mxu0 0.0
    %165 = vmatpush.xpose.msra.mxu0 0.0
    %166 = vmatpush.xpose.msra.mxu0 %v149
    %167 = vmatmul.f32.gmra.mxu0 %v147
    %v168 = vpop.f32.mrf.mxu0
    %v169 = vadd.f32 0.0, %v168
    %170 = vdwg.mxu0
    %172 = vrot.lane.b32.xlu0 %v141, 96
    %v173 = vpop.permute.xlu0 %172
    %v174 = vsel %vm146, %v141, 0
    %v176 = vsel %vm146, %v173, 0
    %178 = vmatpush.xpose.msra.mxu0 0.0
    %179 = vmatpush.xpose.msra.mxu0 0.0
    %180 = vmatpush.xpose.msra.mxu0 0.0
    %181 = vmatpush.xpose.msra.mxu0 0.0
    %182 = vmatpush.xpose.msra.mxu0 0.0
    %183 = vmatpush.xpose.msra.mxu0 0.0
    %184 = vmatpush.xpose.msra.mxu0 0.0
    %185 = vmatpush.xpose.msra.mxu0 0.0
    %186 = vmatpush.xpose.msra.mxu0 0.0
    %187 = vmatpush.xpose.msra.mxu0 0.0
    %188 = vmatpush.xpose.msra.mxu0 0.0
    %189 = vmatpush.xpose.msra.mxu0 0.0
    %190 = vmatpush.xpose.msra.mxu0 0.0
    %191 = vmatpush.xpose.msra.mxu0 0.0
    %192 = vmatpush.xpose.msra.mxu0 0.0
    %193 = vmatpush.xpose.msra.mxu0 %v176
    %194 = vmatmul.f32.gmra.mxu0 %v174
    %v195 = vpop.f32.mrf.mxu0
    %v196 = vadd.f32 0.0, %v195
    %197 = vdwg.mxu0
    %v198 = vsel %vm146, %v169, -inf
    %199 = vmax.xlane.f32.xlu0 %v198
    %v200 = vpop.xlane.xlu0 %199
    %v201 = vsel %vm146, %v196, -inf
    %202 = vmax.xlane.f32.xlu0 %v201
    %v203 = vpop.xlane.xlu0 %202
    %v204 = vsub.f32 %v169, %v200
    %v205 = vsub.f32 %v196, %v203
    %v206 = vmul.f32 %v204, 1.442695
    %v207 = vpow.pop %v206
    %v208 = vmul.f32 %v205, 1.442695
    %v209 = vpow.pop %v208
    %v210 = vsel %vm146, %v207, 0.0
    %211 = vadd.xlane.f32.xlu0 %v210
    %v212 = vpop.xlane.xlu0 %211
    %v213 = vsel %vm146, %v209, 0.0
    %214 = vadd.xlane.f32.xlu0 %v213
    %v215 = vpop.xlane.xlu0 %214
    %v216 = vrcp.pop %v212
    %v217 = vrcp.pop %v215
    %v218 = vmul.f32 %v207, %v216
    %v219 = vmul.f32 %v209, %v217
    %220 = vrot.lane.b32.xlu0 %v138, 64
    %v221 = vpop.permute.xlu0 %220
    %v224 = vsel %vm146, %v218, 0
    %226 = vmatpush.msra.mxu0 0.0
    %227 = vmatpush.msra.mxu0 0.0
    %228 = vmatpush.msra.mxu0 0.0
    %229 = vmatpush.msra.mxu0 0.0
    %230 = vmatpush.msra.mxu0 0.0
    %231 = vmatpush.msra.mxu0 0.0
    %232 = vmatpush.msra.mxu0 0.0
    %233 = vmatpush.msra.mxu0 0.0
    %234 = vmatpush.msra.mxu0 0.0
    %235 = vmatpush.msra.mxu0 0.0
    %236 = vmatpush.msra.mxu0 0.0
    %237 = vmatpush.msra.mxu0 0.0
    %238 = vmatpush.msra.mxu0 0.0
    %239 = vmatpush.msra.mxu0 0.0
    %240 = vmatpush.msra.mxu0 0.0
    %241 = vmatpush.msra.mxu0 %v221
    %242 = vmatmul.f32.gmra.mxu0 %v224
    %v243 = vpop.f32.mrf.mxu0
    %v244 = vadd.f32 0.0, %v243
    %245 = vdwg.mxu0
    %246 = vrot.lane.b32.xlu0 %v141, 64
    %v247 = vpop.permute.xlu0 %246
    %v250 = vsel %vm146, %v219, 0
    %252 = vmatpush.msra.mxu0 0.0
    %253 = vmatpush.msra.mxu0 0.0
    %254 = vmatpush.msra.mxu0 0.0
    %255 = vmatpush.msra.mxu0 0.0
    %256 = vmatpush.msra.mxu0 0.0
    %257 = vmatpush.msra.mxu0 0.0
    %258 = vmatpush.msra.mxu0 0.0
    %259 = vmatpush.msra.mxu0 0.0
    %260 = vmatpush.msra.mxu0 0.0
    %261 = vmatpush.msra.mxu0 0.0
    %262 = vmatpush.msra.mxu0 0.0
    %263 = vmatpush.msra.mxu0 0.0
    %264 = vmatpush.msra.mxu0 0.0
    %265 = vmatpush.msra.mxu0 0.0
    %266 = vmatpush.msra.mxu0 0.0
    %267 = vmatpush.msra.mxu0 %v247
    %268 = vmatmul.f32.gmra.mxu0 %v250
    %v269 = vpop.f32.mrf.mxu0
    %v270 = vadd.f32 0.0, %v269
    %271 = vdwg.mxu0
    %272 = vst.msk [vmem:[#allocation2] sm:$0xff] %vm146, %v244
    %273 = vst.msk [vmem:[#allocation2 + $0x8] sm:$0xff] %vm146, %v270
    %274 = vrot.lane.b32.xlu0 %v138, 120
    %v275 = vpop.permute.xlu0 %274
    %276 = vrot.lane.b32.xlu0 %v138, 88
    %v277 = vpop.permute.xlu0 %276
    %v278 = vsel %vm146, %v275, 0
    %v280 = vsel %vm146, %v277, 0
    %282 = vmatpush.xpose.msra.mxu0 0.0
    %283 = vmatpush.xpose.msra.mxu0 0.0
    %284 = vmatpush.xpose.msra.mxu0 0.0
    %285 = vmatpush.xpose.msra.mxu0 0.0
    %286 = vmatpush.xpose.msra.mxu0 0.0
    %287 = vmatpush.xpose.msra.mxu0 0.0
    %288 = vmatpush.xpose.msra.mxu0 0.0
    %289 = vmatpush.xpose.msra.mxu0 0.0
    %290 = vmatpush.xpose.msra.mxu0 0.0
    %291 = vmatpush.xpose.msra.mxu0 0.0
    %292 = vmatpush.xpose.msra.mxu0 0.0
    %293 = vmatpush.xpose.msra.mxu0 0.0
    %294 = vmatpush.xpose.msra.mxu0 0.0
    %295 = vmatpush.xpose.msra.mxu0 0.0
    %296 = vmatpush.xpose.msra.mxu0 0.0
    %297 = vmatpush.xpose.msra.mxu0 %v280
    %298 = vmatmul.f32.gmra.mxu0 %v278
    %v299 = vpop.f32.mrf.mxu0
    %v300 = vadd.f32 0.0, %v299
    %301 = vdwg.mxu0
    %302 = vrot.lane.b32.xlu0 %v141, 120
    %v303 = vpop.permute.xlu0 %302
    %304 = vrot.lane.b32.xlu0 %v141, 88
    %v305 = vpop.permute.xlu0 %304
    %v306 = vsel %vm146, %v303, 0
    %v308 = vsel %vm146, %v305, 0
    %310 = vmatpush.xpose.msra.mxu0 0.0
    %311 = vmatpush.xpose.msra.mxu0 0.0
    %312 = vmatpush.xpose.msra.mxu0 0.0
    %313 = vmatpush.xpose.msra.mxu0 0.0
    %314 = vmatpush.xpose.msra.mxu0 0.0
    %315 = vmatpush.xpose.msra.mxu0 0.0
    %316 = vmatpush.xpose.msra.mxu0 0.0
    %317 = vmatpush.xpose.msra.mxu0 0.0
    %318 = vmatpush.xpose.msra.mxu0 0.0
    %319 = vmatpush.xpose.msra.mxu0 0.0
    %320 = vmatpush.xpose.msra.mxu0 0.0
    %321 = vmatpush.xpose.msra.mxu0 0.0
    %322 = vmatpush.xpose.msra.mxu0 0.0
    %323 = vmatpush.xpose.msra.mxu0 0.0
    %324 = vmatpush.xpose.msra.mxu0 0.0
    %325 = vmatpush.xpose.msra.mxu0 %v308
    %326 = vmatmul.f32.gmra.mxu0 %v306
    %v327 = vpop.f32.mrf.mxu0
    %v328 = vadd.f32 0.0, %v327
    %329 = vdwg.mxu0
    %v330 = vsel %vm146, %v300, -inf
    %331 = vmax.xlane.f32.xlu0 %v330
    %v332 = vpop.xlane.xlu0 %331
    %v333 = vsel %vm146, %v328, -inf
    %334 = vmax.xlane.f32.xlu0 %v333
    %v335 = vpop.xlane.xlu0 %334
    %v336 = vsub.f32 %v300, %v332
    %v337 = vsub.f32 %v328, %v335
    %v338 = vmul.f32 %v336, 1.442695
    %v339 = vpow.pop %v338
    %v340 = vmul.f32 %v337, 1.442695
    %v341 = vpow.pop %v340
    %v342 = vsel %vm146, %v339, 0.0
    %343 = vadd.xlane.f32.xlu0 %v342
    %v344 = vpop.xlane.xlu0 %343
    %v345 = vsel %vm146, %v341, 0.0
    %346 = vadd.xlane.f32.xlu0 %v345
    %v347 = vpop.xlane.xlu0 %346
    %v348 = vrcp.pop %v344
    %v349 = vrcp.pop %v347
    %v350 = vmul.f32 %v339, %v348
    %v351 = vmul.f32 %v341, %v349
    %352 = vrot.lane.b32.xlu0 %v138, 56
    %v353 = vpop.permute.xlu0 %352
    %v356 = vsel %vm146, %v350, 0
    %358 = vmatpush.msra.mxu0 0.0
    %359 = vmatpush.msra.mxu0 0.0
    %360 = vmatpush.msra.mxu0 0.0
    %361 = vmatpush.msra.mxu0 0.0
    %362 = vmatpush.msra.mxu0 0.0
    %363 = vmatpush.msra.mxu0 0.0
    %364 = vmatpush.msra.mxu0 0.0
    %365 = vmatpush.msra.mxu0 0.0
    %366 = vmatpush.msra.mxu0 0.0
    %367 = vmatpush.msra.mxu0 0.0
    %368 = vmatpush.msra.mxu0 0.0
    %369 = vmatpush.msra.mxu0 0.0
    %370 = vmatpush.msra.mxu0 0.0
    %371 = vmatpush.msra.mxu0 0.0
    %372 = vmatpush.msra.mxu0 0.0
    %373 = vmatpush.msra.mxu0 %v353
    %374 = vmatmul.f32.gmra.mxu0 %v356
    %v375 = vpop.f32.mrf.mxu0
    %v376 = vadd.f32 0.0, %v375
    %377 = vdwg.mxu0
    %378 = vrot.lane.b32.xlu0 %v141, 56
    %v379 = vpop.permute.xlu0 %378
    %v382 = vsel %vm146, %v351, 0
    %384 = vmatpush.msra.mxu0 0.0
    %385 = vmatpush.msra.mxu0 0.0
    %386 = vmatpush.msra.mxu0 0.0
    %387 = vmatpush.msra.mxu0 0.0
    %388 = vmatpush.msra.mxu0 0.0
    %389 = vmatpush.msra.mxu0 0.0
    %390 = vmatpush.msra.mxu0 0.0
    %391 = vmatpush.msra.mxu0 0.0
    %392 = vmatpush.msra.mxu0 0.0
    %393 = vmatpush.msra.mxu0 0.0
    %394 = vmatpush.msra.mxu0 0.0
    %395 = vmatpush.msra.mxu0 0.0
    %396 = vmatpush.msra.mxu0 0.0
    %397 = vmatpush.msra.mxu0 0.0
    %398 = vmatpush.msra.mxu0 0.0
    %399 = vmatpush.msra.mxu0 %v379
    %400 = vmatmul.f32.gmra.mxu0 %v382
    %v401 = vpop.f32.mrf.mxu0
    %v402 = vadd.f32 0.0, %v401
    %403 = vdwg.mxu0
    %406 = vrot.lane.b32.xlu0 %v376, 8
    %v407 = vpop.permute.xlu0 %406
    %408 = vrot.lane.b32.xlu0 %v402, 8
    %v409 = vpop.permute.xlu0 %408
    %vm412 = vcmask 130112
    %413 = vst.msk [vmem:[#allocation2] sm:$0xff] %vm412, %v407
    %414 = vst.msk [vmem:[#allocation2 + $0x8] sm:$0xff] %vm412, %v409
    %415 = vrot.lane.b32.xlu0 %v138, 112
    %v416 = vpop.permute.xlu0 %415
    %417 = vrot.lane.b32.xlu0 %v138, 80
    %v418 = vpop.permute.xlu0 %417
    %v419 = vsel %vm146, %v416, 0
    %v421 = vsel %vm146, %v418, 0
    %423 = vmatpush.xpose.msra.mxu0 0.0
    %424 = vmatpush.xpose.msra.mxu0 0.0
    %425 = vmatpush.xpose.msra.mxu0 0.0
    %426 = vmatpush.xpose.msra.mxu0 0.0
    %427 = vmatpush.xpose.msra.mxu0 0.0
    %428 = vmatpush.xpose.msra.mxu0 0.0
    %429 = vmatpush.xpose.msra.mxu0 0.0
    %430 = vmatpush.xpose.msra.mxu0 0.0
    %431 = vmatpush.xpose.msra.mxu0 0.0
    %432 = vmatpush.xpose.msra.mxu0 0.0
    %433 = vmatpush.xpose.msra.mxu0 0.0
    %434 = vmatpush.xpose.msra.mxu0 0.0
    %435 = vmatpush.xpose.msra.mxu0 0.0
    %436 = vmatpush.xpose.msra.mxu0 0.0
    %437 = vmatpush.xpose.msra.mxu0 0.0
    %438 = vmatpush.xpose.msra.mxu0 %v421
    %439 = vmatmul.f32.gmra.mxu0 %v419
    %v440 = vpop.f32.mrf.mxu0
    %v441 = vadd.f32 0.0, %v440
    %442 = vdwg.mxu0
    %443 = vrot.lane.b32.xlu0 %v141, 112
    %v444 = vpop.permute.xlu0 %443
    %445 = vrot.lane.b32.xlu0 %v141, 80
    %v446 = vpop.permute.xlu0 %445
    %v447 = vsel %vm146, %v444, 0
    %v449 = vsel %vm146, %v446, 0
    %451 = vmatpush.xpose.msra.mxu0 0.0
    %452 = vmatpush.xpose.msra.mxu0 0.0
    %453 = vmatpush.xpose.msra.mxu0 0.0
    %454 = vmatpush.xpose.msra.mxu0 0.0
    %455 = vmatpush.xpose.msra.mxu0 0.0
    %456 = vmatpush.xpose.msra.mxu0 0.0
    %457 = vmatpush.xpose.msra.mxu0 0.0
    %458 = vmatpush.xpose.msra.mxu0 0.0
    %459 = vmatpush.xpose.msra.mxu0 0.0
    %460 = vmatpush.xpose.msra.mxu0 0.0
    %461 = vmatpush.xpose.msra.mxu0 0.0
    %462 = vmatpush.xpose.msra.mxu0 0.0
    %463 = vmatpush.xpose.msra.mxu0 0.0
    %464 = vmatpush.xpose.msra.mxu0 0.0
    %465 = vmatpush.xpose.msra.mxu0 0.0
    %466 = vmatpush.xpose.msra.mxu0 %v449
    %467 = vmatmul.f32.gmra.mxu0 %v447
    %v468 = vpop.f32.mrf.mxu0
    %v469 = vadd.f32 0.0, %v468
    %470 = vdwg.mxu0
    %v471 = vsel %vm146, %v441, -inf
    %472 = vmax.xlane.f32.xlu0 %v471
    %v473 = vpop.xlane.xlu0 %472
    %v474 = vsel %vm146, %v469, -inf
    %475 = vmax.xlane.f32.xlu0 %v474
    %v476 = vpop.xlane.xlu0 %475
    %v477 = vsub.f32 %v441, %v473
    %v478 = vsub.f32 %v469, %v476
    %v479 = vmul.f32 %v477, 1.442695
    %v480 = vpow.pop %v479
    %v481 = vmul.f32 %v478, 1.442695
    %v482 = vpow.pop %v481
    %v483 = vsel %vm146, %v480, 0.0
    %484 = vadd.xlane.f32.xlu0 %v483
    %v485 = vpop.xlane.xlu0 %484
    %v486 = vsel %vm146, %v482, 0.0
    %487 = vadd.xlane.f32.xlu0 %v486
    %v488 = vpop.xlane.xlu0 %487
    %v489 = vrcp.pop %v485
    %v490 = vrcp.pop %v488
    %v491 = vmul.f32 %v480, %v489
    %v492 = vmul.f32 %v482, %v490
    %493 = vrot.lane.b32.xlu0 %v138, 48
    %v494 = vpop.permute.xlu0 %493
    %v497 = vsel %vm146, %v491, 0
    %499 = vmatpush.msra.mxu0 0.0
    %500 = vmatpush.msra.mxu0 0.0
    %501 = vmatpush.msra.mxu0 0.0
    %502 = vmatpush.msra.mxu0 0.0
    %503 = vmatpush.msra.mxu0 0.0
    %504 = vmatpush.msra.mxu0 0.0
    %505 = vmatpush.msra.mxu0 0.0
    %506 = vmatpush.msra.mxu0 0.0
    %507 = vmatpush.msra.mxu0 0.0
    %508 = vmatpush.msra.mxu0 0.0
    %509 = vmatpush.msra.mxu0 0.0
    %510 = vmatpush.msra.mxu0 0.0
    %511 = vmatpush.msra.mxu0 0.0
    %512 = vmatpush.msra.mxu0 0.0
    %513 = vmatpush.msra.mxu0 0.0
    %514 = vmatpush.msra.mxu0 %v494
    %515 = vmatmul.f32.gmra.mxu0 %v497
    %v516 = vpop.f32.mrf.mxu0
    %v517 = vadd.f32 0.0, %v516
    %518 = vdwg.mxu0
    %519 = vrot.lane.b32.xlu0 %v141, 48
    %v520 = vpop.permute.xlu0 %519
    %v523 = vsel %vm146, %v492, 0
    %525 = vmatpush.msra.mxu0 0.0
    %526 = vmatpush.msra.mxu0 0.0
    %527 = vmatpush.msra.mxu0 0.0
    %528 = vmatpush.msra.mxu0 0.0
    %529 = vmatpush.msra.mxu0 0.0
    %530 = vmatpush.msra.mxu0 0.0
    %531 = vmatpush.msra.mxu0 0.0
    %532 = vmatpush.msra.mxu0 0.0
    %533 = vmatpush.msra.mxu0 0.0
    %534 = vmatpush.msra.mxu0 0.0
    %535 = vmatpush.msra.mxu0 0.0
    %536 = vmatpush.msra.mxu0 0.0
    %537 = vmatpush.msra.mxu0 0.0
    %538 = vmatpush.msra.mxu0 0.0
    %539 = vmatpush.msra.mxu0 0.0
    %540 = vmatpush.msra.mxu0 %v520
    %541 = vmatmul.f32.gmra.mxu0 %v523
    %v542 = vpop.f32.mrf.mxu0
    %v543 = vadd.f32 0.0, %v542
    %544 = vdwg.mxu0
    %547 = vrot.lane.b32.xlu0 %v517, 16
    %v548 = vpop.permute.xlu0 %547
    %549 = vrot.lane.b32.xlu0 %v543, 16
    %v550 = vpop.permute.xlu0 %549
    %vm553 = vcmask 195712
    %554 = vst.msk [vmem:[#allocation2] sm:$0xff] %vm553, %v548
    %555 = vst.msk [vmem:[#allocation2 + $0x8] sm:$0xff] %vm553, %v550
    %556 = vrot.lane.b32.xlu0 %v138, 104
    %v557 = vpop.permute.xlu0 %556
    %558 = vrot.lane.b32.xlu0 %v138, 72
    %v559 = vpop.permute.xlu0 %558
    %v560 = vsel %vm146, %v557, 0
    %v562 = vsel %vm146, %v559, 0
    %564 = vmatpush.xpose.msra.mxu0 0.0
    %565 = vmatpush.xpose.msra.mxu0 0.0
    %566 = vmatpush.xpose.msra.mxu0 0.0
    %567 = vmatpush.xpose.msra.mxu0 0.0
    %568 = vmatpush.xpose.msra.mxu0 0.0
    %569 = vmatpush.xpose.msra.mxu0 0.0
    %570 = vmatpush.xpose.msra.mxu0 0.0
    %571 = vmatpush.xpose.msra.mxu0 0.0
    %572 = vmatpush.xpose.msra.mxu0 0.0
    %573 = vmatpush.xpose.msra.mxu0 0.0
    %574 = vmatpush.xpose.msra.mxu0 0.0
    %575 = vmatpush.xpose.msra.mxu0 0.0
    %576 = vmatpush.xpose.msra.mxu0 0.0
    %577 = vmatpush.xpose.msra.mxu0 0.0
    %578 = vmatpush.xpose.msra.mxu0 0.0
    %579 = vmatpush.xpose.msra.mxu0 %v562
    %580 = vmatmul.f32.gmra.mxu0 %v560
    %v581 = vpop.f32.mrf.mxu0
    %v582 = vadd.f32 0.0, %v581
    %583 = vdwg.mxu0
    %584 = vrot.lane.b32.xlu0 %v141, 104
    %v585 = vpop.permute.xlu0 %584
    %586 = vrot.lane.b32.xlu0 %v141, 72
    %v587 = vpop.permute.xlu0 %586
    %v588 = vsel %vm146, %v585, 0
    %v590 = vsel %vm146, %v587, 0
    %592 = vmatpush.xpose.msra.mxu0 0.0
    %593 = vmatpush.xpose.msra.mxu0 0.0
    %594 = vmatpush.xpose.msra.mxu0 0.0
    %595 = vmatpush.xpose.msra.mxu0 0.0
    %596 = vmatpush.xpose.msra.mxu0 0.0
    %597 = vmatpush.xpose.msra.mxu0 0.0
    %598 = vmatpush.xpose.msra.mxu0 0.0
    %599 = vmatpush.xpose.msra.mxu0 0.0
    %600 = vmatpush.xpose.msra.mxu0 0.0
    %601 = vmatpush.xpose.msra.mxu0 0.0
    %602 = vmatpush.xpose.msra.mxu0 0.0
    %603 = vmatpush.xpose.msra.mxu0 0.0
    %604 = vmatpush.xpose.msra.mxu0 0.0
    %605 = vmatpush.xpose.msra.mxu0 0.0
    %606 = vmatpush.xpose.msra.mxu0 0.0
    %607 = vmatpush.xpose.msra.mxu0 %v590
    %608 = vmatmul.f32.gmra.mxu0 %v588
    %v609 = vpop.f32.mrf.mxu0
    %v610 = vadd.f32 0.0, %v609
    %611 = vdwg.mxu0
    %v612 = vsel %vm146, %v582, -inf
    %613 = vmax.xlane.f32.xlu0 %v612
    %v614 = vpop.xlane.xlu0 %613
    %v615 = vsel %vm146, %v610, -inf
    %616 = vmax.xlane.f32.xlu0 %v615
    %v617 = vpop.xlane.xlu0 %616
    %v618 = vsub.f32 %v582, %v614
    %v619 = vsub.f32 %v610, %v617
    %v620 = vmul.f32 %v618, 1.442695
    %v621 = vpow.pop %v620
    %v622 = vmul.f32 %v619, 1.442695
    %v623 = vpow.pop %v622
    %v624 = vsel %vm146, %v621, 0.0
    %625 = vadd.xlane.f32.xlu0 %v624
    %v626 = vpop.xlane.xlu0 %625
    %v627 = vsel %vm146, %v623, 0.0
    %628 = vadd.xlane.f32.xlu0 %v627
    %v629 = vpop.xlane.xlu0 %628
    %v630 = vrcp.pop %v626
    %v631 = vrcp.pop %v629
    %v632 = vmul.f32 %v621, %v630
    %v633 = vmul.f32 %v623, %v631
    %634 = vrot.lane.b32.xlu0 %v138, 40
    %v635 = vpop.permute.xlu0 %634
    %v638 = vsel %vm146, %v632, 0
    %640 = vmatpush.msra.mxu0 0.0
    %641 = vmatpush.msra.mxu0 0.0
    %642 = vmatpush.msra.mxu0 0.0
    %643 = vmatpush.msra.mxu0 0.0
    %644 = vmatpush.msra.mxu0 0.0
    %645 = vmatpush.msra.mxu0 0.0
    %646 = vmatpush.msra.mxu0 0.0
    %647 = vmatpush.msra.mxu0 0.0
    %648 = vmatpush.msra.mxu0 0.0
    %649 = vmatpush.msra.mxu0 0.0
    %650 = vmatpush.msra.mxu0 0.0
    %651 = vmatpush.msra.mxu0 0.0
    %652 = vmatpush.msra.mxu0 0.0
    %653 = vmatpush.msra.mxu0 0.0
    %654 = vmatpush.msra.mxu0 0.0
    %655 = vmatpush.msra.mxu0 %v635
    %656 = vmatmul.f32.gmra.mxu0 %v638
    %v657 = vpop.f32.mrf.mxu0
    %v658 = vadd.f32 0.0, %v657
    %659 = vdwg.mxu0
    %660 = vrot.lane.b32.xlu0 %v141, 40
    %v661 = vpop.permute.xlu0 %660
    %v664 = vsel %vm146, %v633, 0
    %666 = vmatpush.msra.mxu0 0.0
    %667 = vmatpush.msra.mxu0 0.0
    %668 = vmatpush.msra.mxu0 0.0
    %669 = vmatpush.msra.mxu0 0.0
    %670 = vmatpush.msra.mxu0 0.0
    %671 = vmatpush.msra.mxu0 0.0
    %672 = vmatpush.msra.mxu0 0.0
    %673 = vmatpush.msra.mxu0 0.0
    %674 = vmatpush.msra.mxu0 0.0
    %675 = vmatpush.msra.mxu0 0.0
    %676 = vmatpush.msra.mxu0 0.0
    %677 = vmatpush.msra.mxu0 0.0
    %678 = vmatpush.msra.mxu0 0.0
    %679 = vmatpush.msra.mxu0 0.0
    %680 = vmatpush.msra.mxu0 0.0
    %681 = vmatpush.msra.mxu0 %v661
    %682 = vmatmul.f32.gmra.mxu0 %v664
    %v683 = vpop.f32.mrf.mxu0
    %v684 = vadd.f32 0.0, %v683
    %685 = vdwg.mxu0
    %688 = vrot.lane.b32.xlu0 %v658, 24
    %v689 = vpop.permute.xlu0 %688
    %690 = vrot.lane.b32.xlu0 %v684, 24
    %v691 = vpop.permute.xlu0 %690
    %vm694 = vcmask 261312
    %695 = vst.msk [vmem:[#allocation2] sm:$0xff] %vm694, %v689
    %696 = vst.msk [vmem:[#allocation2 + $0x8] sm:$0xff] %vm694, %v691
    %v697 = vld [vmem:[#allocation2] sm:$0xff]
    %v698 = vld [vmem:[#allocation2 + $0x8] sm:$0xff]
    %v699 = vperm.slane %v50, 0
    %704 = vrot.lane.b32.xlu0 %v23, 32
    %v705 = vpop.permute.xlu0 %704
    %706 = vrot.lane.b32.xlu0 %v24, 32
    %v707 = vpop.permute.xlu0 %706
    %708 = vrot.lane.b32.xlu0 %v25, 32
    %v709 = vpop.permute.xlu0 %708
    %710 = vrot.lane.b32.xlu0 %v26, 32
    %v711 = vpop.permute.xlu0 %710
    %v717 = vsel %vm55, %v697, 0
    %v720 = vsel %vm55, %v698, 0
    %722 = vmatpush.msra.mxu0 0.0
    %723 = vmatpush.msra.mxu0 0.0
    %724 = vmatpush.msra.mxu0 0.0
    %725 = vmatpush.msra.mxu0 0.0
    %726 = vmatpush.msra.mxu0 0.0
    %727 = vmatpush.msra.mxu0 0.0
    %728 = vmatpush.msra.mxu0 0.0
    %729 = vmatpush.msra.mxu0 0.0
    %730 = vmatpush.msra.mxu0 0.0
    %731 = vmatpush.msra.mxu0 0.0
    %732 = vmatpush.msra.mxu0 0.0
    %733 = vmatpush.msra.mxu0 0.0
    %734 = vmatpush.msra.mxu0 %v711
    %735 = vmatpush.msra.mxu0 %v709
    %736 = vmatpush.msra.mxu0 %v707
    %737 = vmatpush.msra.mxu0 %v705
    %738 = vmatmul.f32.gmra.mxu0 %v717
    %v739 = vpop.f32.mrf.mxu0
    %v740 = vadd.f32 %v699, %v739
    %741 = vmatmul.f32.gmra.mxu0 %v720
    %v742 = vpop.f32.mrf.mxu0
    %v743 = vadd.f32 %v699, %v742
    %744 = vdwg.mxu0
    %v745 = vadd.f32 %v111, %v740
    %v746 = vadd.f32 %v112, %v743
    %v747 = vsel %vm55, %v745, 0.0
    %748 = vadd.xlane.f32.xlu0 %v747
    %v749 = vpop.xlane.xlu0 %748
    %v750 = vsel %vm55, %v746, 0.0
    %751 = vadd.xlane.f32.xlu0 %v750
    %v752 = vpop.xlane.xlu0 %751
    %v753 = vmul.f32 %v749, %v68
    %v754 = vmul.f32 %v752, %v68
    %v755 = vsub.f32 %v745, %v753
    %v756 = vsub.f32 %v746, %v754
    %v757 = vmul.f32 %v755, %v755
    %v758 = vmul.f32 %v756, %v756
    %v759 = vsel %vm55, %v757, 0.0
    %760 = vadd.xlane.f32.xlu0 %v759
    %v761 = vpop.xlane.xlu0 %760
    %v762 = vsel %vm55, %v758, 0.0
    %763 = vadd.xlane.f32.xlu0 %v762
    %v764 = vpop.xlane.xlu0 %763
    %v765 = vmul.f32 %v761, %v68
    %v766 = vmul.f32 %v764, %v68
    %v767 = vadd.f32 %v765, 1e-05
    %v768 = vadd.f32 %v766, 1e-05
    %v769 = vrsqrt.pop %v767
    %v770 = vmul.f32 %v769, %v767
    %v771 = vmul.f32 %v770, %v769
    %v772 = vmul.f32 0.5, %v771
    %v773 = vsub.f32 1.5, %v772
    %v774 = vmul.f32 %v769, %v773
    %vm775 = vweird.f32 %v767
    %vm776 = vweird.f32 %v769
    %vm777 = vmor %vm775, %vm776
    %v778 = vsel %vm777, %v769, %v774
    %v779 = vrsqrt.pop %v768
    %v780 = vmul.f32 %v779, %v768
    %v781 = vmul.f32 %v780, %v779
    %v782 = vmul.f32 0.5, %v781
    %v783 = vsub.f32 1.5, %v782
    %v784 = vmul.f32 %v779, %v783
    %vm785 = vweird.f32 %v768
    %vm786 = vweird.f32 %v779
    %vm787 = vmor %vm785, %vm786
    %v788 = vsel %vm787, %v779, %v784
    %v789 = vmul.f32 %v755, %v778
    %v790 = vmul.f32 %v756, %v788
    %v791 = vperm.slane %v51, 0
    %v792 = vmul.f32 %v789, %v791
    %v793 = vmul.f32 %v790, %v791
    %v794 = vperm.slane %v52, 0
    %v795 = vadd.f32 %v792, %v794
    %v796 = vadd.f32 %v793, %v794
    %v797 = vperm.slane %v53, 0
    %v799 = vsel %vm55, %v795, 0
    %v802 = vsel %vm55, %v796, 0
    %804 = vmatpush.msra.mxu0 0.0
    %805 = vmatpush.msra.mxu0 0.0
    %806 = vmatpush.msra.mxu0 0.0
    %807 = vmatpush.msra.mxu0 0.0
    %808 = vmatpush.msra.mxu0 0.0
    %809 = vmatpush.msra.mxu0 0.0
    %810 = vmatpush.msra.mxu0 0.0
    %811 = vmatpush.msra.mxu0 0.0
    %812 = vmatpush.msra.mxu0 0.0
    %813 = vmatpush.msra.mxu0 0.0
    %814 = vmatpush.msra.mxu0 0.0
    %815 = vmatpush.msra.mxu0 0.0
    %816 = vmatpush.msra.mxu0 %v30
    %817 = vmatpush.msra.mxu0 %v29
    %818 = vmatpush.msra.mxu0 %v28
    %819 = vmatpush.msra.mxu0 %v27
    %820 = vmatmul.f32.gmra.mxu0 %v799
    %v821 = vpop.f32.mrf.mxu0
    %v822 = vadd.f32 %v797, %v821
    %823 = vmatmul.f32.gmra.mxu0 %v802
    %v824 = vpop.f32.mrf.mxu0
    %v825 = vadd.f32 %v797, %v824
    %826 = vdwg.mxu0
    %v827 = vmax.f32 %v822, 0.0
    %v828 = vmax.f32 %v825, 0.0
    %829 = vmatpush.msra.mxu0 %v46
    %830 = vmatpush.msra.mxu0 %v45
    %831 = vmatpush.msra.mxu0 %v44
    %832 = vmatpush.msra.mxu0 %v43
    %833 = vmatpush.msra.mxu0 %v42
    %834 = vmatpush.msra.mxu0 %v41
    %835 = vmatpush.msra.mxu0 %v40
    %836 = vmatpush.msra.mxu0 %v39
    %837 = vmatpush.msra.mxu0 %v38
    %838 = vmatpush.msra.mxu0 %v37
    %839 = vmatpush.msra.mxu0 %v36
    %840 = vmatpush.msra.mxu0 %v35
    %841 = vmatpush.msra.mxu0 %v34
    %842 = vmatpush.msra.mxu0 %v33
    %843 = vmatpush.msra.mxu0 %v32
    %844 = vmatpush.msra.mxu0 %v31
    %845 = vmatmul.f32.gmra.mxu0 %v827
    %v846 = vpop.f32.mrf.mxu0
    %v847 = vadd.f32 0.0, %v846
    %848 = vmatmul.f32.gmra.mxu0 %v828
    %v849 = vpop.f32.mrf.mxu0
    %v850 = vadd.f32 0.0, %v849
    %851 = vdwg.mxu0
    %v852 = vadd.f32 %v745, %v847
    %v853 = vadd.f32 %v746, %v850
    %v854 = vperm.slane %v54, 0
    %v855 = vadd.f32 %v852, %v854
    %v856 = vadd.f32 %v853, %v854
    %s857 = scalar_lea.vmem %s1, 64
    %v858 = vld [vmem:[%s857] sm:$0xff]
    %v859 = vld [vmem:[%s857 + $0x10] sm:$0xff]
    %v860 = vld [vmem:[%s857 + $0x20] sm:$0xff]
    %v861 = vld [vmem:[%s857 + $0x30] sm:$0xff]
    %v862 = vld [vmem:[%s857 + $0x8] sm:$0xff]
    %v863 = vld [vmem:[%s857 + $0x18] sm:$0xff]
    %v864 = vld [vmem:[%s857 + $0x28] sm:$0xff]
    %v865 = vld [vmem:[%s857 + $0x38] sm:$0xff]
    %s866 = scalar_lea.vmem %s2, 128
    %v867 = vld [vmem:[%s866] sm:$0xff]
    %v868 = vld [vmem:[%s866 + $0x8] sm:$0xff]
    %v869 = vld [vmem:[%s866 + $0x10] sm:$0xff]
    %v870 = vld [vmem:[%s866 + $0x18] sm:$0xff]
    %v871 = vld [vmem:[%s866 + $0x20] sm:$0xff]
    %v872 = vld [vmem:[%s866 + $0x28] sm:$0xff]
    %v873 = vld [vmem:[%s866 + $0x30] sm:$0xff]
    %v874 = vld [vmem:[%s866 + $0x38] sm:$0xff]
    %v875 = vld [vmem:[%s866 + $0x40] sm:$0xff]
    %v876 = vld [vmem:[%s866 + $0x48] sm:$0xff]
    %v877 = vld [vmem:[%s866 + $0x50] sm:$0xff]
    %v878 = vld [vmem:[%s866 + $0x58] sm:$0xff]
    %v879 = vld [vmem:[%s866 + $0x60] sm:$0xff]
    %v880 = vld [vmem:[%s866 + $0x68] sm:$0xff]
    %v881 = vld [vmem:[%s866 + $0x70] sm:$0xff]
    %v882 = vld [vmem:[%s866 + $0x78] sm:$0xff]
    %s883 = scalar_lea.vmem %s3, 8
    %v884 = vld [vmem:[%s883] sm:$0x1]
    %v885 = vld [vmem:[%s883 + $0x1] sm:$0x1]
    %v886 = vld [vmem:[%s883 + $0x2] sm:$0x1]
    %v887 = vld [vmem:[%s883 + $0x3] sm:$0x1]
    %v888 = vld [vmem:[%s883 + $0x4] sm:$0x1]
    %v889 = vld [vmem:[%s883 + $0x5] sm:$0x1]
    %v890 = vld [vmem:[%s883 + $0x6] sm:$0x1]
    %v891 = vld [vmem:[%s883 + $0x7] sm:$0x1]
    %v892 = vsel %vm55, %v855, 0.0
    %893 = vadd.xlane.f32.xlu0 %v892
    %v894 = vpop.xlane.xlu0 %893
    %v895 = vsel %vm55, %v856, 0.0
    %896 = vadd.xlane.f32.xlu0 %v895
    %v897 = vpop.xlane.xlu0 %896
    %v898 = vmul.f32 %v894, %v68
    %v899 = vmul.f32 %v897, %v68
    %v900 = vsub.f32 %v855, %v898
    %v901 = vsub.f32 %v856, %v899
    %v902 = vmul.f32 %v900, %v900
    %v903 = vmul.f32 %v901, %v901
    %v904 = vsel %vm55, %v902, 0.0
    %905 = vadd.xlane.f32.xlu0 %v904
    %v906 = vpop.xlane.xlu0 %905
    %v907 = vsel %vm55, %v903, 0.0
    %908 = vadd.xlane.f32.xlu0 %v907
    %v909 = vpop.xlane.xlu0 %908
    %v910 = vmul.f32 %v906, %v68
    %v911 = vmul.f32 %v909, %v68
    %v912 = vadd.f32 %v910, 1e-05
    %v913 = vadd.f32 %v911, 1e-05
    %v914 = vrsqrt.pop %v912
    %v915 = vmul.f32 %v914, %v912
    %v916 = vmul.f32 %v915, %v914
    %v917 = vmul.f32 0.5, %v916
    %v918 = vsub.f32 1.5, %v917
    %v919 = vmul.f32 %v914, %v918
    %vm920 = vweird.f32 %v912
    %vm921 = vweird.f32 %v914
    %vm922 = vmor %vm920, %vm921
    %v923 = vsel %vm922, %v914, %v919
    %v924 = vrsqrt.pop %v913
    %v925 = vmul.f32 %v924, %v913
    %v926 = vmul.f32 %v925, %v924
    %v927 = vmul.f32 0.5, %v926
    %v928 = vsub.f32 1.5, %v927
    %v929 = vmul.f32 %v924, %v928
    %vm930 = vweird.f32 %v913
    %vm931 = vweird.f32 %v924
    %vm932 = vmor %vm930, %vm931
    %v933 = vsel %vm932, %v924, %v929
    %v934 = vmul.f32 %v900, %v923
    %v935 = vmul.f32 %v901, %v933
    %v936 = vperm.slane %v884, 0
    %v937 = vmul.f32 %v934, %v936
    %v938 = vmul.f32 %v935, %v936
    %v939 = vperm.slane %v885, 0
    %v940 = vadd.f32 %v937, %v939
    %v941 = vadd.f32 %v938, %v939
    %v942 = vperm.slane %v886, 0
    %v944 = vsel %vm55, %v940, 0
    %v947 = vsel %vm55, %v941, 0
    %949 = vmatpush.msra.mxu0 0.0
    %950 = vmatpush.msra.mxu0 0.0
    %951 = vmatpush.msra.mxu0 0.0
    %952 = vmatpush.msra.mxu0 0.0
    %953 = vmatpush.msra.mxu0 0.0
    %954 = vmatpush.msra.mxu0 0.0
    %955 = vmatpush.msra.mxu0 0.0
    %956 = vmatpush.msra.mxu0 0.0
    %957 = vmatpush.msra.mxu0 0.0
    %958 = vmatpush.msra.mxu0 0.0
    %959 = vmatpush.msra.mxu0 0.0
    %960 = vmatpush.msra.mxu0 0.0
    %961 = vmatpush.msra.mxu0 %v861
    %962 = vmatpush.msra.mxu0 %v860
    %963 = vmatpush.msra.mxu0 %v859
    %964 = vmatpush.msra.mxu0 %v858
    %965 = vmatmul.f32.gmra.mxu0 %v944
    %v966 = vpop.f32.mrf.mxu0
    %v967 = vadd.f32 %v942, %v966
    %968 = vmatmul.f32.gmra.mxu0 %v947
    %v969 = vpop.f32.mrf.mxu0
    %v970 = vadd.f32 %v942, %v969
    %971 = vdwg.mxu0
    %973 = vrot.lane.b32.xlu0 %v967, 96
    %v974 = vpop.permute.xlu0 %973
    %v975 = vsel %vm146, %v967, 0
    %v977 = vsel %vm146, %v974, 0
    %979 = vmatpush.xpose.msra.mxu0 0.0
    %980 = vmatpush.xpose.msra.mxu0 0.0
    %981 = vmatpush.xpose.msra.mxu0 0.0
    %982 = vmatpush.xpose.msra.mxu0 0.0
    %983 = vmatpush.xpose.msra.mxu0 0.0
    %984 = vmatpush.xpose.msra.mxu0 0.0
    %985 = vmatpush.xpose.msra.mxu0 0.0
    %986 = vmatpush.xpose.msra.mxu0 0.0
    %987 = vmatpush.xpose.msra.mxu0 0.0
    %988 = vmatpush.xpose.msra.mxu0 0.0
    %989 = vmatpush.xpose.msra.mxu0 0.0
    %990 = vmatpush.xpose.msra.mxu0 0.0
    %991 = vmatpush.xpose.msra.mxu0 0.0
    %992 = vmatpush.xpose.msra.mxu0 0.0
    %993 = vmatpush.xpose.msra.mxu0 0.0
    %994 = vmatpush.xpose.msra.mxu0 %v977
    %995 = vmatmul.f32.gmra.mxu0 %v975
    %v996 = vpop.f32.mrf.mxu0
    %v997 = vadd.f32 0.0, %v996
    %998 = vdwg.mxu0
    %1000 = vrot.lane.b32.xlu0 %v970, 96
    %v1001 = vpop.permute.xlu0 %1000
    %v1002 = vsel %vm146, %v970, 0
    %v1004 = vsel %vm146, %v1001, 0
    %1006 = vmatpush.xpose.msra.mxu0 0.0
    %1007 = vmatpush.xpose.msra.mxu0 0.0
    %1008 = vmatpush.xpose.msra.mxu0 0.0
    %1009 = vmatpush.xpose.msra.mxu0 0.0
    %1010 = vmatpush.xpose.msra.mxu0 0.0
    %1011 = vmatpush.xpose.msra.mxu0 0.0
    %1012 = vmatpush.xpose.msra.mxu0 0.0
    %1013 = vmatpush.xpose.msra.mxu0 0.0
    %1014 = vmatpush.xpose.msra.mxu0 0.0
    %1015 = vmatpush.xpose.msra.mxu0 0.0
    %1016 = vmatpush.xpose.msra.mxu0 0.0
    %1017 = vmatpush.xpose.msra.mxu0 0.0
    %1018 = vmatpush.xpose.msra.mxu0 0.0
    %1019 = vmatpush.xpose.msra.mxu0 0.0
    %1020 = vmatpush.xpose.msra.mxu0 0.0
    %1021 = vmatpush.xpose.msra.mxu0 %v1004
    %1022 = vmatmul.f32.gmra.mxu0 %v1002
    %v1023 = vpop.f32.mrf.mxu0
    %v1024 = vadd.f32 0.0, %v1023
    %1025 = vdwg.mxu0
    %v1026 = vsel %vm146, %v997, -inf
    %1027 = vmax.xlane.f32.xlu0 %v1026
    %v1028 = vpop.xlane.xlu0 %1027
    %v1029 = vsel %vm146, %v1024, -inf
    %1030 = vmax.xlane.f32.xlu0 %v1029
    %v1031 = vpop.xlane.xlu0 %1030
    %v1032 = vsub.f32 %v997, %v1028
    %v1033 = vsub.f32 %v1024, %v1031
    %v1034 = vmul.f32 %v1032, 1.442695
    %v1035 = vpow.pop %v1034
    %v1036 = vmul.f32 %v1033, 1.442695
    %v1037 = vpow.pop %v1036
    %v1038 = vsel %vm146, %v1035, 0.0
    %1039 = vadd.xlane.f32.xlu0 %v1038
    %v1040 = vpop.xlane.xlu0 %1039
    %v1041 = vsel %vm146, %v1037, 0.0
    %1042 = vadd.xlane.f32.xlu0 %v1041
    %v1043 = vpop.xlane.xlu0 %1042
    %v1044 = vrcp.pop %v1040
    %v1045 = vrcp.pop %v1043
    %v1046 = vmul.f32 %v1035, %v1044
    %v1047 = vmul.f32 %v1037, %v1045
    %1048 = vrot.lane.b32.xlu0 %v967, 64
    %v1049 = vpop.permute.xlu0 %1048
    %v1052 = vsel %vm146, %v1046, 0
    %1054 = vmatpush.msra.mxu0 0.0
    %1055 = vmatpush.msra.mxu0 0.0
    %1056 = vmatpush.msra.mxu0 0.0
    %1057 = vmatpush.msra.mxu0 0.0
    %1058 = vmatpush.msra.mxu0 0.0
    %1059 = vmatpush.msra.mxu0 0.0
    %1060 = vmatpush.msra.mxu0 0.0
    %1061 = vmatpush.msra.mxu0 0.0
    %1062 = vmatpush.msra.mxu0 0.0
    %1063 = vmatpush.msra.mxu0 0.0
    %1064 = vmatpush.msra.mxu0 0.0
    %1065 = vmatpush.msra.mxu0 0.0
    %1066 = vmatpush.msra.mxu0 0.0
    %1067 = vmatpush.msra.mxu0 0.0
    %1068 = vmatpush.msra.mxu0 0.0
    %1069 = vmatpush.msra.mxu0 %v1049
    %1070 = vmatmul.f32.gmra.mxu0 %v1052
    %v1071 = vpop.f32.mrf.mxu0
    %v1072 = vadd.f32 0.0, %v1071
    %1073 = vdwg.mxu0
    %1074 = vrot.lane.b32.xlu0 %v970, 64
    %v1075 = vpop.permute.xlu0 %1074
    %v1078 = vsel %vm146, %v1047, 0
    %1080 = vmatpush.msra.mxu0 0.0
    %1081 = vmatpush.msra.mxu0 0.0
    %1082 = vmatpush.msra.mxu0 0.0
    %1083 = vmatpush.msra.mxu0 0.0
    %1084 = vmatpush.msra.mxu0 0.0
    %1085 = vmatpush.msra.mxu0 0.0
    %1086 = vmatpush.msra.mxu0 0.0
    %1087 = vmatpush.msra.mxu0 0.0
    %1088 = vmatpush.msra.mxu0 0.0
    %1089 = vmatpush.msra.mxu0 0.0
    %1090 = vmatpush.msra.mxu0 0.0
    %1091 = vmatpush.msra.mxu0 0.0
    %1092 = vmatpush.msra.mxu0 0.0
    %1093 = vmatpush.msra.mxu0 0.0
    %1094 = vmatpush.msra.mxu0 0.0
    %1095 = vmatpush.msra.mxu0 %v1075
    %1096 = vmatmul.f32.gmra.mxu0 %v1078
    %v1097 = vpop.f32.mrf.mxu0
    %v1098 = vadd.f32 0.0, %v1097
    %1099 = vdwg.mxu0
    %1100 = vst.msk [vmem:[#allocation2] sm:$0xff] %vm146, %v1072
    %1101 = vst.msk [vmem:[#allocation2 + $0x8] sm:$0xff] %vm146, %v1098
    %1102 = vrot.lane.b32.xlu0 %v967, 120
    %v1103 = vpop.permute.xlu0 %1102
    %1104 = vrot.lane.b32.xlu0 %v967, 88
    %v1105 = vpop.permute.xlu0 %1104
    %v1106 = vsel %vm146, %v1103, 0
    %v1108 = vsel %vm146, %v1105, 0
    %1110 = vmatpush.xpose.msra.mxu0 0.0
    %1111 = vmatpush.xpose.msra.mxu0 0.0
    %1112 = vmatpush.xpose.msra.mxu0 0.0
    %1113 = vmatpush.xpose.msra.mxu0 0.0
    %1114 = vmatpush.xpose.msra.mxu0 0.0
    %1115 = vmatpush.xpose.msra.mxu0 0.0
    %1116 = vmatpush.xpose.msra.mxu0 0.0
    %1117 = vmatpush.xpose.msra.mxu0 0.0
    %1118 = vmatpush.xpose.msra.mxu0 0.0
    %1119 = vmatpush.xpose.msra.mxu0 0.0
    %1120 = vmatpush.xpose.msra.mxu0 0.0
    %1121 = vmatpush.xpose.msra.mxu0 0.0
    %1122 = vmatpush.xpose.msra.mxu0 0.0
    %1123 = vmatpush.xpose.msra.mxu0 0.0
    %1124 = vmatpush.xpose.msra.mxu0 0.0
    %1125 = vmatpush.xpose.msra.mxu0 %v1108
    %1126 = vmatmul.f32.gmra.mxu0 %v1106
    %v1127 = vpop.f32.mrf.mxu0
    %v1128 = vadd.f32 0.0, %v1127
    %1129 = vdwg.mxu0
    %1130 = vrot.lane.b32.xlu0 %v970, 120
    %v1131 = vpop.permute.xlu0 %1130
    %1132 = vrot.lane.b32.xlu0 %v970, 88
    %v1133 = vpop.permute.xlu0 %1132
    %v1134 = vsel %vm146, %v1131, 0
    %v1136 = vsel %vm146, %v1133, 0
    %1138 = vmatpush.xpose.msra.mxu0 0.0
    %1139 = vmatpush.xpose.msra.mxu0 0.0
    %1140 = vmatpush.xpose.msra.mxu0 0.0
    %1141 = vmatpush.xpose.msra.mxu0 0.0
    %1142 = vmatpush.xpose.msra.mxu0 0.0
    %1143 = vmatpush.xpose.msra.mxu0 0.0
    %1144 = vmatpush.xpose.msra.mxu0 0.0
    %1145 = vmatpush.xpose.msra.mxu0 0.0
    %1146 = vmatpush.xpose.msra.mxu0 0.0
    %1147 = vmatpush.xpose.msra.mxu0 0.0
    %1148 = vmatpush.xpose.msra.mxu0 0.0
    %1149 = vmatpush.xpose.msra.mxu0 0.0
    %1150 = vmatpush.xpose.msra.mxu0 0.0
    %1151 = vmatpush.xpose.msra.mxu0 0.0
    %1152 = vmatpush.xpose.msra.mxu0 0.0
    %1153 = vmatpush.xpose.msra.mxu0 %v1136
    %1154 = vmatmul.f32.gmra.mxu0 %v1134
    %v1155 = vpop.f32.mrf.mxu0
    %v1156 = vadd.f32 0.0, %v1155
    %1157 = vdwg.mxu0
    %v1158 = vsel %vm146, %v1128, -inf
    %1159 = vmax.xlane.f32.xlu0 %v1158
    %v1160 = vpop.xlane.xlu0 %1159
    %v1161 = vsel %vm146, %v1156, -inf
    %1162 = vmax.xlane.f32.xlu0 %v1161
    %v1163 = vpop.xlane.xlu0 %1162
    %v1164 = vsub.f32 %v1128, %v1160
    %v1165 = vsub.f32 %v1156, %v1163
    %v1166 = vmul.f32 %v1164, 1.442695
    %v1167 = vpow.pop %v1166
    %v1168 = vmul.f32 %v1165, 1.442695
    %v1169 = vpow.pop %v1168
    %v1170 = vsel %vm146, %v1167, 0.0
    %1171 = vadd.xlane.f32.xlu0 %v1170
    %v1172 = vpop.xlane.xlu0 %1171
    %v1173 = vsel %vm146, %v1169, 0.0
    %1174 = vadd.xlane.f32.xlu0 %v1173
    %v1175 = vpop.xlane.xlu0 %1174
    %v1176 = vrcp.pop %v1172
    %v1177 = vrcp.pop %v1175
    %v1178 = vmul.f32 %v1167, %v1176
    %v1179 = vmul.f32 %v1169, %v1177
    %1180 = vrot.lane.b32.xlu0 %v967, 56
    %v1181 = vpop.permute.xlu0 %1180
    %v1184 = vsel %vm146, %v1178, 0
    %1186 = vmatpush.msra.mxu0 0.0
    %1187 = vmatpush.msra.mxu0 0.0
    %1188 = vmatpush.msra.mxu0 0.0
    %1189 = vmatpush.msra.mxu0 0.0
    %1190 = vmatpush.msra.mxu0 0.0
    %1191 = vmatpush.msra.mxu0 0.0
    %1192 = vmatpush.msra.mxu0 0.0
    %1193 = vmatpush.msra.mxu0 0.0
    %1194 = vmatpush.msra.mxu0 0.0
    %1195 = vmatpush.msra.mxu0 0.0
    %1196 = vmatpush.msra.mxu0 0.0
    %1197 = vmatpush.msra.mxu0 0.0
    %1198 = vmatpush.msra.mxu0 0.0
    %1199 = vmatpush.msra.mxu0 0.0
    %1200 = vmatpush.msra.mxu0 0.0
    %1201 = vmatpush.msra.mxu0 %v1181
    %1202 = vmatmul.f32.gmra.mxu0 %v1184
    %v1203 = vpop.f32.mrf.mxu0
    %v1204 = vadd.f32 0.0, %v1203
    %1205 = vdwg.mxu0
    %1206 = vrot.lane.b32.xlu0 %v970, 56
    %v1207 = vpop.permute.xlu0 %1206
    %v1210 = vsel %vm146, %v1179, 0
    %1212 = vmatpush.msra.mxu0 0.0
    %1213 = vmatpush.msra.mxu0 0.0
    %1214 = vmatpush.msra.mxu0 0.0
    %1215 = vmatpush.msra.mxu0 0.0
    %1216 = vmatpush.msra.mxu0 0.0
    %1217 = vmatpush.msra.mxu0 0.0
    %1218 = vmatpush.msra.mxu0 0.0
    %1219 = vmatpush.msra.mxu0 0.0
    %1220 = vmatpush.msra.mxu0 0.0
    %1221 = vmatpush.msra.mxu0 0.0
    %1222 = vmatpush.msra.mxu0 0.0
    %1223 = vmatpush.msra.mxu0 0.0
    %1224 = vmatpush.msra.mxu0 0.0
    %1225 = vmatpush.msra.mxu0 0.0
    %1226 = vmatpush.msra.mxu0 0.0
    %1227 = vmatpush.msra.mxu0 %v1207
    %1228 = vmatmul.f32.gmra.mxu0 %v1210
    %v1229 = vpop.f32.mrf.mxu0
    %v1230 = vadd.f32 0.0, %v1229
    %1231 = vdwg.mxu0
    %1234 = vrot.lane.b32.xlu0 %v1204, 8
    %v1235 = vpop.permute.xlu0 %1234
    %1236 = vrot.lane.b32.xlu0 %v1230, 8
    %v1237 = vpop.permute.xlu0 %1236
    %1240 = vst.msk [vmem:[#allocation2] sm:$0xff] %vm412, %v1235
    %1241 = vst.msk [vmem:[#allocation2 + $0x8] sm:$0xff] %vm412, %v1237
    %1242 = vrot.lane.b32.xlu0 %v967, 112
    %v1243 = vpop.permute.xlu0 %1242
    %1244 = vrot.lane.b32.xlu0 %v967, 80
    %v1245 = vpop.permute.xlu0 %1244
    %v1246 = vsel %vm146, %v1243, 0
    %v1248 = vsel %vm146, %v1245, 0
    %1250 = vmatpush.xpose.msra.mxu0 0.0
    %1251 = vmatpush.xpose.msra.mxu0 0.0
    %1252 = vmatpush.xpose.msra.mxu0 0.0
    %1253 = vmatpush.xpose.msra.mxu0 0.0
    %1254 = vmatpush.xpose.msra.mxu0 0.0
    %1255 = vmatpush.xpose.msra.mxu0 0.0
    %1256 = vmatpush.xpose.msra.mxu0 0.0
    %1257 = vmatpush.xpose.msra.mxu0 0.0
    %1258 = vmatpush.xpose.msra.mxu0 0.0
    %1259 = vmatpush.xpose.msra.mxu0 0.0
    %1260 = vmatpush.xpose.msra.mxu0 0.0
    %1261 = vmatpush.xpose.msra.mxu0 0.0
    %1262 = vmatpush.xpose.msra.mxu0 0.0
    %1263 = vmatpush.xpose.msra.mxu0 0.0
    %1264 = vmatpush.xpose.msra.mxu0 0.0
    %1265 = vmatpush.xpose.msra.mxu0 %v1248
    %1266 = vmatmul.f32.gmra.mxu0 %v1246
    %v1267 = vpop.f32.mrf.mxu0
    %v1268 = vadd.f32 0.0, %v1267
    %1269 = vdwg.mxu0
    %1270 = vrot.lane.b32.xlu0 %v970, 112
    %v1271 = vpop.permute.xlu0 %1270
    %1272 = vrot.lane.b32.xlu0 %v970, 80
    %v1273 = vpop.permute.xlu0 %1272
    %v1274 = vsel %vm146, %v1271, 0
    %v1276 = vsel %vm146, %v1273, 0
    %1278 = vmatpush.xpose.msra.mxu0 0.0
    %1279 = vmatpush.xpose.msra.mxu0 0.0
    %1280 = vmatpush.xpose.msra.mxu0 0.0
    %1281 = vmatpush.xpose.msra.mxu0 0.0
    %1282 = vmatpush.xpose.msra.mxu0 0.0
    %1283 = vmatpush.xpose.msra.mxu0 0.0
    %1284 = vmatpush.xpose.msra.mxu0 0.0
    %1285 = vmatpush.xpose.msra.mxu0 0.0
    %1286 = vmatpush.xpose.msra.mxu0 0.0
    %1287 = vmatpush.xpose.msra.mxu0 0.0
    %1288 = vmatpush.xpose.msra.mxu0 0.0
    %1289 = vmatpush.xpose.msra.mxu0 0.0
    %1290 = vmatpush.xpose.msra.mxu0 0.0
    %1291 = vmatpush.xpose.msra.mxu0 0.0
    %1292 = vmatpush.xpose.msra.mxu0 0.0
    %1293 = vmatpush.xpose.msra.mxu0 %v1276
    %1294 = vmatmul.f32.gmra.mxu0 %v1274
    %v1295 = vpop.f32.mrf.mxu0
    %v1296 = vadd.f32 0.0, %v1295
    %1297 = vdwg.mxu0
    %v1298 = vsel %vm146, %v1268, -inf
    %1299 = vmax.xlane.f32.xlu0 %v1298
    %v1300 = vpop.xlane.xlu0 %1299
    %v1301 = vsel %vm146, %v1296, -inf
    %1302 = vmax.xlane.f32.xlu0 %v1301
    %v1303 = vpop.xlane.xlu0 %1302
    %v1304 = vsub.f32 %v1268, %v1300
    %v1305 = vsub.f32 %v1296, %v1303
    %v1306 = vmul.f32 %v1304, 1.442695
    %v1307 = vpow.pop %v1306
    %v1308 = vmul.f32 %v1305, 1.442695
    %v1309 = vpow.pop %v1308
    %v1310 = vsel %vm146, %v1307, 0.0
    %1311 = vadd.xlane.f32.xlu0 %v1310
    %v1312 = vpop.xlane.xlu0 %1311
    %v1313 = vsel %vm146, %v1309, 0.0
    %1314 = vadd.xlane.f32.xlu0 %v1313
    %v1315 = vpop.xlane.xlu0 %1314
    %v1316 = vrcp.pop %v1312
    %v1317 = vrcp.pop %v1315
    %v1318 = vmul.f32 %v1307, %v1316
    %v1319 = vmul.f32 %v1309, %v1317
    %1320 = vrot.lane.b32.xlu0 %v967, 48
    %v1321 = vpop.permute.xlu0 %1320
    %v1324 = vsel %vm146, %v1318, 0
    %1326 = vmatpush.msra.mxu0 0.0
    %1327 = vmatpush.msra.mxu0 0.0
    %1328 = vmatpush.msra.mxu0 0.0
    %1329 = vmatpush.msra.mxu0 0.0
    %1330 = vmatpush.msra.mxu0 0.0
    %1331 = vmatpush.msra.mxu0 0.0
    %1332 = vmatpush.msra.mxu0 0.0
    %1333 = vmatpush.msra.mxu0 0.0
    %1334 = vmatpush.msra.mxu0 0.0
    %1335 = vmatpush.msra.mxu0 0.0
    %1336 = vmatpush.msra.mxu0 0.0
    %1337 = vmatpush.msra.mxu0 0.0
    %1338 = vmatpush.msra.mxu0 0.0
    %1339 = vmatpush.msra.mxu0 0.0
    %1340 = vmatpush.msra.mxu0 0.0
    %1341 = vmatpush.msra.mxu0 %v1321
    %1342 = vmatmul.f32.gmra.mxu0 %v1324
    %v1343 = vpop.f32.mrf.mxu0
    %v1344 = vadd.f32 0.0, %v1343
    %1345 = vdwg.mxu0
    %1346 = vrot.lane.b32.xlu0 %v970, 48
    %v1347 = vpop.permute.xlu0 %1346
    %v1350 = vsel %vm146, %v1319, 0
    %1352 = vmatpush.msra.mxu0 0.0
    %1353 = vmatpush.msra.mxu0 0.0
    %1354 = vmatpush.msra.mxu0 0.0
    %1355 = vmatpush.msra.mxu0 0.0
    %1356 = vmatpush.msra.mxu0 0.0
    %1357 = vmatpush.msra.mxu0 0.0
    %1358 = vmatpush.msra.mxu0 0.0
    %1359 = vmatpush.msra.mxu0 0.0
    %1360 = vmatpush.msra.mxu0 0.0
    %1361 = vmatpush.msra.mxu0 0.0
    %1362 = vmatpush.msra.mxu0 0.0
    %1363 = vmatpush.msra.mxu0 0.0
    %1364 = vmatpush.msra.mxu0 0.0
    %1365 = vmatpush.msra.mxu0 0.0
    %1366 = vmatpush.msra.mxu0 0.0
    %1367 = vmatpush.msra.mxu0 %v1347
    %1368 = vmatmul.f32.gmra.mxu0 %v1350
    %v1369 = vpop.f32.mrf.mxu0
    %v1370 = vadd.f32 0.0, %v1369
    %1371 = vdwg.mxu0
    %1374 = vrot.lane.b32.xlu0 %v1344, 16
    %v1375 = vpop.permute.xlu0 %1374
    %1376 = vrot.lane.b32.xlu0 %v1370, 16
    %v1377 = vpop.permute.xlu0 %1376
    %1380 = vst.msk [vmem:[#allocation2] sm:$0xff] %vm553, %v1375
    %1381 = vst.msk [vmem:[#allocation2 + $0x8] sm:$0xff] %vm553, %v1377
    %1382 = vrot.lane.b32.xlu0 %v967, 104
    %v1383 = vpop.permute.xlu0 %1382
    %1384 = vrot.lane.b32.xlu0 %v967, 72
    %v1385 = vpop.permute.xlu0 %1384
    %v1386 = vsel %vm146, %v1383, 0
    %v1388 = vsel %vm146, %v1385, 0
    %1390 = vmatpush.xpose.msra.mxu0 0.0
    %1391 = vmatpush.xpose.msra.mxu0 0.0
    %1392 = vmatpush.xpose.msra.mxu0 0.0
    %1393 = vmatpush.xpose.msra.mxu0 0.0
    %1394 = vmatpush.xpose.msra.mxu0 0.0
    %1395 = vmatpush.xpose.msra.mxu0 0.0
    %1396 = vmatpush.xpose.msra.mxu0 0.0
    %1397 = vmatpush.xpose.msra.mxu0 0.0
    %1398 = vmatpush.xpose.msra.mxu0 0.0
    %1399 = vmatpush.xpose.msra.mxu0 0.0
    %1400 = vmatpush.xpose.msra.mxu0 0.0
    %1401 = vmatpush.xpose.msra.mxu0 0.0
    %1402 = vmatpush.xpose.msra.mxu0 0.0
    %1403 = vmatpush.xpose.msra.mxu0 0.0
    %1404 = vmatpush.xpose.msra.mxu0 0.0
    %1405 = vmatpush.xpose.msra.mxu0 %v1388
    %1406 = vmatmul.f32.gmra.mxu0 %v1386
    %v1407 = vpop.f32.mrf.mxu0
    %v1408 = vadd.f32 0.0, %v1407
    %1409 = vdwg.mxu0
    %1410 = vrot.lane.b32.xlu0 %v970, 104
    %v1411 = vpop.permute.xlu0 %1410
    %1412 = vrot.lane.b32.xlu0 %v970, 72
    %v1413 = vpop.permute.xlu0 %1412
    %v1414 = vsel %vm146, %v1411, 0
    %v1416 = vsel %vm146, %v1413, 0
    %1418 = vmatpush.xpose.msra.mxu0 0.0
    %1419 = vmatpush.xpose.msra.mxu0 0.0
    %1420 = vmatpush.xpose.msra.mxu0 0.0
    %1421 = vmatpush.xpose.msra.mxu0 0.0
    %1422 = vmatpush.xpose.msra.mxu0 0.0
    %1423 = vmatpush.xpose.msra.mxu0 0.0
    %1424 = vmatpush.xpose.msra.mxu0 0.0
    %1425 = vmatpush.xpose.msra.mxu0 0.0
    %1426 = vmatpush.xpose.msra.mxu0 0.0
    %1427 = vmatpush.xpose.msra.mxu0 0.0
    %1428 = vmatpush.xpose.msra.mxu0 0.0
    %1429 = vmatpush.xpose.msra.mxu0 0.0
    %1430 = vmatpush.xpose.msra.mxu0 0.0
    %1431 = vmatpush.xpose.msra.mxu0 0.0
    %1432 = vmatpush.xpose.msra.mxu0 0.0
    %1433 = vmatpush.xpose.msra.mxu0 %v1416
    %1434 = vmatmul.f32.gmra.mxu0 %v1414
    %v1435 = vpop.f32.mrf.mxu0
    %v1436 = vadd.f32 0.0, %v1435
    %1437 = vdwg.mxu0
    %v1438 = vsel %vm146, %v1408, -inf
    %1439 = vmax.xlane.f32.xlu0 %v1438
    %v1440 = vpop.xlane.xlu0 %1439
    %v1441 = vsel %vm146, %v1436, -inf
    %1442 = vmax.xlane.f32.xlu0 %v1441
    %v1443 = vpop.xlane.xlu0 %1442
    %v1444 = vsub.f32 %v1408, %v1440
    %v1445 = vsub.f32 %v1436, %v1443
    %v1446 = vmul.f32 %v1444, 1.442695
    %v1447 = vpow.pop %v1446
    %v1448 = vmul.f32 %v1445, 1.442695
    %v1449 = vpow.pop %v1448
    %v1450 = vsel %vm146, %v1447, 0.0
    %1451 = vadd.xlane.f32.xlu0 %v1450
    %v1452 = vpop.xlane.xlu0 %1451
    %v1453 = vsel %vm146, %v1449, 0.0
    %1454 = vadd.xlane.f32.xlu0 %v1453
    %v1455 = vpop.xlane.xlu0 %1454
    %v1456 = vrcp.pop %v1452
    %v1457 = vrcp.pop %v1455
    %v1458 = vmul.f32 %v1447, %v1456
    %v1459 = vmul.f32 %v1449, %v1457
    %1460 = vrot.lane.b32.xlu0 %v967, 40
    %v1461 = vpop.permute.xlu0 %1460
    %v1464 = vsel %vm146, %v1458, 0
    %1466 = vmatpush.msra.mxu0 0.0
    %1467 = vmatpush.msra.mxu0 0.0
    %1468 = vmatpush.msra.mxu0 0.0
    %1469 = vmatpush.msra.mxu0 0.0
    %1470 = vmatpush.msra.mxu0 0.0
    %1471 = vmatpush.msra.mxu0 0.0
    %1472 = vmatpush.msra.mxu0 0.0
    %1473 = vmatpush.msra.mxu0 0.0
    %1474 = vmatpush.msra.mxu0 0.0
    %1475 = vmatpush.msra.mxu0 0.0
    %1476 = vmatpush.msra.mxu0 0.0
    %1477 = vmatpush.msra.mxu0 0.0
    %1478 = vmatpush.msra.mxu0 0.0
    %1479 = vmatpush.msra.mxu0 0.0
    %1480 = vmatpush.msra.mxu0 0.0
    %1481 = vmatpush.msra.mxu0 %v1461
    %1482 = vmatmul.f32.gmra.mxu0 %v1464
    %v1483 = vpop.f32.mrf.mxu0
    %v1484 = vadd.f32 0.0, %v1483
    %1485 = vdwg.mxu0
    %1486 = vrot.lane.b32.xlu0 %v970, 40
    %v1487 = vpop.permute.xlu0 %1486
    %v1490 = vsel %vm146, %v1459, 0
    %1492 = vmatpush.msra.mxu0 0.0
    %1493 = vmatpush.msra.mxu0 0.0
    %1494 = vmatpush.msra.mxu0 0.0
    %1495 = vmatpush.msra.mxu0 0.0
    %1496 = vmatpush.msra.mxu0 0.0
    %1497 = vmatpush.msra.mxu0 0.0
    %1498 = vmatpush.msra.mxu0 0.0
    %1499 = vmatpush.msra.mxu0 0.0
    %1500 = vmatpush.msra.mxu0 0.0
    %1501 = vmatpush.msra.mxu0 0.0
    %1502 = vmatpush.msra.mxu0 0.0
    %1503 = vmatpush.msra.mxu0 0.0
    %1504 = vmatpush.msra.mxu0 0.0
    %1505 = vmatpush.msra.mxu0 0.0
    %1506 = vmatpush.msra.mxu0 0.0
    %1507 = vmatpush.msra.mxu0 %v1487
    %1508 = vmatmul.f32.gmra.mxu0 %v1490
    %v1509 = vpop.f32.mrf.mxu0
    %v1510 = vadd.f32 0.0, %v1509
    %1511 = vdwg.mxu0
    %1514 = vrot.lane.b32.xlu0 %v1484, 24
    %v1515 = vpop.permute.xlu0 %1514
    %1516 = vrot.lane.b32.xlu0 %v1510, 24
    %v1517 = vpop.permute.xlu0 %1516
    %1520 = vst.msk [vmem:[#allocation2] sm:$0xff] %vm694, %v1515
    %1521 = vst.msk [vmem:[#allocation2 + $0x8] sm:$0xff] %vm694, %v1517
    %v1522 = vld [vmem:[#allocation2] sm:$0xff]
    %v1523 = vld [vmem:[#allocation2 + $0x8] sm:$0xff]
    %v1524 = vperm.slane %v887, 0
    %1529 = vrot.lane.b32.xlu0 %v858, 32
    %v1530 = vpop.permute.xlu0 %1529
    %1531 = vrot.lane.b32.xlu0 %v859, 32
    %v1532 = vpop.permute.xlu0 %1531
    %1533 = vrot.lane.b32.xlu0 %v860, 32
    %v1534 = vpop.permute.xlu0 %1533
    %1535 = vrot.lane.b32.xlu0 %v861, 32
    %v1536 = vpop.permute.xlu0 %1535
    %v1542 = vsel %vm55, %v1522, 0
    %v1545 = vsel %vm55, %v1523, 0
    %1547 = vmatpush.msra.mxu0 0.0
    %1548 = vmatpush.msra.mxu0 0.0
    %1549 = vmatpush.msra.mxu0 0.0
    %1550 = vmatpush.msra.mxu0 0.0
    %1551 = vmatpush.msra.mxu0 0.0
    %1552 = vmatpush.msra.mxu0 0.0
    %1553 = vmatpush.msra.mxu0 0.0
    %1554 = vmatpush.msra.mxu0 0.0
    %1555 = vmatpush.msra.mxu0 0.0
    %1556 = vmatpush.msra.mxu0 0.0
    %1557 = vmatpush.msra.mxu0 0.0
    %1558 = vmatpush.msra.mxu0 0.0
    %1559 = vmatpush.msra.mxu0 %v1536
    %1560 = vmatpush.msra.mxu0 %v1534
    %1561 = vmatpush.msra.mxu0 %v1532
    %1562 = vmatpush.msra.mxu0 %v1530
    %1563 = vmatmul.f32.gmra.mxu0 %v1542
    %v1564 = vpop.f32.mrf.mxu0
    %v1565 = vadd.f32 %v1524, %v1564
    %1566 = vmatmul.f32.gmra.mxu0 %v1545
    %v1567 = vpop.f32.mrf.mxu0
    %v1568 = vadd.f32 %v1524, %v1567
    %1569 = vdwg.mxu0
    %v1570 = vadd.f32 %v940, %v1565
    %v1571 = vadd.f32 %v941, %v1568
    %v1572 = vsel %vm55, %v1570, 0.0
    %1573 = vadd.xlane.f32.xlu0 %v1572
    %v1574 = vpop.xlane.xlu0 %1573
    %v1575 = vsel %vm55, %v1571, 0.0
    %1576 = vadd.xlane.f32.xlu0 %v1575
    %v1577 = vpop.xlane.xlu0 %1576
    %v1578 = vmul.f32 %v1574, %v68
    %v1579 = vmul.f32 %v1577, %v68
    %v1580 = vsub.f32 %v1570, %v1578
    %v1581 = vsub.f32 %v1571, %v1579
    %v1582 = vmul.f32 %v1580, %v1580
    %v1583 = vmul.f32 %v1581, %v1581
    %v1584 = vsel %vm55, %v1582, 0.0
    %1585 = vadd.xlane.f32.xlu0 %v1584
    %v1586 = vpop.xlane.xlu0 %1585
    %v1587 = vsel %vm55, %v1583, 0.0
    %1588 = vadd.xlane.f32.xlu0 %v1587
    %v1589 = vpop.xlane.xlu0 %1588
    %v1590 = vmul.f32 %v1586, %v68
    %v1591 = vmul.f32 %v1589, %v68
    %v1592 = vadd.f32 %v1590, 1e-05
    %v1593 = vadd.f32 %v1591, 1e-05
    %v1594 = vrsqrt.pop %v1592
    %v1595 = vmul.f32 %v1594, %v1592
    %v1596 = vmul.f32 %v1595, %v1594
    %v1597 = vmul.f32 0.5, %v1596
    %v1598 = vsub.f32 1.5, %v1597
    %v1599 = vmul.f32 %v1594, %v1598
    %vm1600 = vweird.f32 %v1592
    %vm1601 = vweird.f32 %v1594
    %vm1602 = vmor %vm1600, %vm1601
    %v1603 = vsel %vm1602, %v1594, %v1599
    %v1604 = vrsqrt.pop %v1593
    %v1605 = vmul.f32 %v1604, %v1593
    %v1606 = vmul.f32 %v1605, %v1604
    %v1607 = vmul.f32 0.5, %v1606
    %v1608 = vsub.f32 1.5, %v1607
    %v1609 = vmul.f32 %v1604, %v1608
    %vm1610 = vweird.f32 %v1593
    %vm1611 = vweird.f32 %v1604
    %vm1612 = vmor %vm1610, %vm1611
    %v1613 = vsel %vm1612, %v1604, %v1609
    %v1614 = vmul.f32 %v1580, %v1603
    %v1615 = vmul.f32 %v1581, %v1613
    %v1616 = vperm.slane %v888, 0
    %v1617 = vmul.f32 %v1614, %v1616
    %v1618 = vmul.f32 %v1615, %v1616
    %v1619 = vperm.slane %v889, 0
    %v1620 = vadd.f32 %v1617, %v1619
    %v1621 = vadd.f32 %v1618, %v1619
    %v1622 = vperm.slane %v890, 0
    %v1624 = vsel %vm55, %v1620, 0
    %v1627 = vsel %vm55, %v1621, 0
    %1629 = vmatpush.msra.mxu0 0.0
    %1630 = vmatpush.msra.mxu0 0.0
    %1631 = vmatpush.msra.mxu0 0.0
    %1632 = vmatpush.msra.mxu0 0.0
    %1633 = vmatpush.msra.mxu0 0.0
    %1634 = vmatpush.msra.mxu0 0.0
    %1635 = vmatpush.msra.mxu0 0.0
    %1636 = vmatpush.msra.mxu0 0.0
    %1637 = vmatpush.msra.mxu0 0.0
    %1638 = vmatpush.msra.mxu0 0.0
    %1639 = vmatpush.msra.mxu0 0.0
    %1640 = vmatpush.msra.mxu0 0.0
    %1641 = vmatpush.msra.mxu0 %v865
    %1642 = vmatpush.msra.mxu0 %v864
    %1643 = vmatpush.msra.mxu0 %v863
    %1644 = vmatpush.msra.mxu0 %v862
    %1645 = vmatmul.f32.gmra.mxu0 %v1624
    %v1646 = vpop.f32.mrf.mxu0
    %v1647 = vadd.f32 %v1622, %v1646
    %1648 = vmatmul.f32.gmra.mxu0 %v1627
    %v1649 = vpop.f32.mrf.mxu0
    %v1650 = vadd.f32 %v1622, %v1649
    %1651 = vdwg.mxu0
    %v1652 = vmax.f32 %v1647, 0.0
    %v1653 = vmax.f32 %v1650, 0.0
    %1654 = vmatpush.msra.mxu0 %v882
    %1655 = vmatpush.msra.mxu0 %v881
    %1656 = vmatpush.msra.mxu0 %v880
    %1657 = vmatpush.msra.mxu0 %v879
    %1658 = vmatpush.msra.mxu0 %v878
    %1659 = vmatpush.msra.mxu0 %v877
    %1660 = vmatpush.msra.mxu0 %v876
    %1661 = vmatpush.msra.mxu0 %v875
    %1662 = vmatpush.msra.mxu0 %v874
    %1663 = vmatpush.msra.mxu0 %v873
    %1664 = vmatpush.msra.mxu0 %v872
    %1665 = vmatpush.msra.mxu0 %v871
    %1666 = vmatpush.msra.mxu0 %v870
    %1667 = vmatpush.msra.mxu0 %v869
    %1668 = vmatpush.msra.mxu0 %v868
    %1669 = vmatpush.msra.mxu0 %v867
    %1670 = vmatmul.f32.gmra.mxu0 %v1652
    %v1671 = vpop.f32.mrf.mxu0
    %v1672 = vadd.f32 0.0, %v1671
    %1673 = vmatmul.f32.gmra.mxu0 %v1653
    %v1674 = vpop.f32.mrf.mxu0
    %v1675 = vadd.f32 0.0, %v1674
    %1676 = vdwg.mxu0
    %v1677 = vadd.f32 %v1570, %v1672
    %v1678 = vadd.f32 %v1571, %v1675
    %v1679 = vperm.slane %v891, 0
    %v1680 = vadd.f32 %v1677, %v1679
    %v1681 = vadd.f32 %v1678, %v1679
    %v1682 = vld [vmem:[%s4] sm:$0x1]
    %v1683 = vld [vmem:[%s4 + $0x1] sm:$0x1]
    %v1684 = vsel %vm55, %v1680, 0.0
    %1685 = vadd.xlane.f32.xlu0 %v1684
    %v1686 = vpop.xlane.xlu0 %1685
    %v1687 = vsel %vm55, %v1681, 0.0
    %1688 = vadd.xlane.f32.xlu0 %v1687
    %v1689 = vpop.xlane.xlu0 %1688
    %v1690 = vmul.f32 %v1686, %v68
    %v1691 = vmul.f32 %v1689, %v68
    %v1692 = vsub.f32 %v1680, %v1690
    %v1693 = vsub.f32 %v1681, %v1691
    %v1694 = vmul.f32 %v1692, %v1692
    %v1695 = vmul.f32 %v1693, %v1693
    %v1696 = vsel %vm55, %v1694, 0.0
    %1697 = vadd.xlane.f32.xlu0 %v1696
    %v1698 = vpop.xlane.xlu0 %1697
    %v1699 = vsel %vm55, %v1695, 0.0
    %1700 = vadd.xlane.f32.xlu0 %v1699
    %v1701 = vpop.xlane.xlu0 %1700
    %v1702 = vmul.f32 %v1698, %v68
    %v1703 = vmul.f32 %v1701, %v68
    %v1704 = vadd.f32 %v1702, 1e-05
    %v1705 = vadd.f32 %v1703, 1e-05
    %v1706 = vrsqrt.pop %v1704
    %v1707 = vmul.f32 %v1706, %v1704
    %v1708 = vmul.f32 %v1707, %v1706
    %v1709 = vmul.f32 0.5, %v1708
    %v1710 = vsub.f32 1.5, %v1709
    %v1711 = vmul.f32 %v1706, %v1710
    %vm1712 = vweird.f32 %v1704
    %vm1713 = vweird.f32 %v1706
    %vm1714 = vmor %vm1712, %vm1713
    %v1715 = vsel %vm1714, %v1706, %v1711
    %v1716 = vrsqrt.pop %v1705
    %v1717 = vmul.f32 %v1716, %v1705
    %v1718 = vmul.f32 %v1717, %v1716
    %v1719 = vmul.f32 0.5, %v1718
    %v1720 = vsub.f32 1.5, %v1719
    %v1721 = vmul.f32 %v1716, %v1720
    %vm1722 = vweird.f32 %v1705
    %vm1723 = vweird.f32 %v1716
    %vm1724 = vmor %vm1722, %vm1723
    %v1725 = vsel %vm1724, %v1716, %v1721
    %v1726 = vmul.f32 %v1692, %v1715
    %v1727 = vmul.f32 %v1693, %v1725
    %v1728 = vperm.slane %v1682, 0
    %v1729 = vmul.f32 %v1726, %v1728
    %v1730 = vmul.f32 %v1727, %v1728
    %v1731 = vperm.slane %v1683, 0
    %v1732 = vadd.f32 %v1729, %v1731
    %v1733 = vadd.f32 %v1730, %v1731
    %1734 = vst.msk [vmem:[#allocation3] sm:$0xff] %vm55, %v1732
    %1735 = vst.msk [vmem:[#allocation3 + $0x8] sm:$0xff] %vm55, %v1733
    // Predicated region
    $region22: #{encoder_forward.1} parent=1 // pred_check
      _
    $region23: #{encoder_forward.1} parent=1 // pred_check_branch
      %1737 = sbr.rel (0) target = $region25
    $region24: #{encoder_forward.1} parent=1 // pred_region
      %1739 = vsyncadd [#allocation4], 0
      %s1740 = sshll.u32 [#allocation3], 4
      %s1741 = int_to_ptr.vmem [resolvable:$true] %s1740
      %s1742 = sshll.u32 %s5, 4
      %s1743 = int_to_ptr.hbm [resolvable:$true] %s1742
      %1748 = dma.vmem_to_hbm [thread:$0]  %s1741, 256, %s1743, [#allocation4], 128, 128, 8
    $region25: #{encoder_forward.1} parent=1 // pred_fallthru
      _
    // Predicated region
    $region26: #{encoder_forward.1} parent=1 // pred_check
      _
    $region27: #{encoder_forward.1} parent=1 // pred_check_branch
      %1750 = sbr.rel (0) target = $region29
    $region28: #{encoder_forward.1} parent=1 // pred_region
      %1752 = dma.done [#allocation4], 256
    $region29: #{encoder_forward.1} parent=1 // pred_fallthru
      _
    %1753 = vsyncpa [#allocation4], 1

</llo_original>
